<compile_context>
chip_gen: v7x
topology: tpu7x:2x2x1
jax: 0.10.0
libtpu: 0.0.40
codegen_flags: <defaults>
</compile_context>

<pallas_src>
import jax
import jax.numpy as jnp
from jax.experimental import pallas as pl
from jax.experimental.pallas import tpu as pltpu


# ----------------------------------------------------------------------------
# Fused attention-gate kernel (one grid step = one batch element)
# ----------------------------------------------------------------------------
def _attention_kernel(x_ref, g_ref, tw_ref, pw_ref, b_ref, psw_ref, psb_ref,
                      sel_ref, ut_ref, o_ref):
    x = x_ref[0]                                     # [C,  H*W]    f32 (channel-major)
    g = g_ref[0]                                     # [Cg, Hh*Wh]  f32

    # Stride-2 subsample as an exact 0/1 selection matmul: [C, H*W] @ [H*W, Hh*Wh].
    x_bf = x.astype(jnp.bfloat16)
    x_sub = jnp.dot(x_bf, sel_ref[...], preferred_element_type=jnp.float32)
    x_sub = x_sub.astype(jnp.bfloat16)               # exact: values already bf16

    # theta_x + phi_g (+ fused theta_b + phi_b), relu -- f32 accumulate in registers.
    theta_phi = (
        jnp.dot(tw_ref[...], x_sub, preferred_element_type=jnp.float32)
        + jnp.dot(pw_ref[...], g.astype(jnp.bfloat16),
                  preferred_element_type=jnp.float32)
        + b_ref[...]
    )
    add = jnp.maximum(theta_phi, 0.0)                # [C, Hh*Wh] f32

    # psi (Cout=1): VPU multiply + sublane reduction -> [1, Hh*Wh] row (no 1-row matmul).
    psi = jnp.sum(add * psw_ref[...], axis=0, keepdims=True) + psb_ref[...]
    s = jax.nn.sigmoid(psi)                          # [1, Hh*Wh]

    # Bilinear x2 upsample (align_corners=True): single-channel gate row [1, H*W].
    gate = jnp.dot(s, ut_ref[...], preferred_element_type=jnp.float32)

    # Apply gate via sublane broadcast; output is already in NCHW layout.
    o_ref[0] = (x * gate).astype(o_ref.dtype)


# ----------------------------------------------------------------------------
# Host-side glue (reshapes + tiny constant matrices only; no transposes)
# ----------------------------------------------------------------------------
def _bilinear_matrix(n_in):
    """[2n, n] interpolation matrix: Upsample(scale=2, bilinear, align_corners=True)."""
    n_out = 2 * n_in
    if n_in == 1:
        return jnp.ones((n_out, 1), jnp.float32)
    src = jnp.arange(n_out, dtype=jnp.float32) * (n_in - 1) / (n_out - 1)
    lo = jnp.clip(jnp.floor(src).astype(jnp.int32), 0, n_in - 2)
    frac = src - lo.astype(jnp.float32)
    U = jnp.zeros((n_out, n_in), jnp.float32)
    U = U.at[jnp.arange(n_out), lo].set(1.0 - frac)
    U = U.at[jnp.arange(n_out), lo + 1].add(frac)
    return U


def attention_block(params, x, gating):
    """Fused AttentionBlock.forward(x, gating). x: [N,C,H,W], gating: [N,Cg,H/2,W/2]."""
    N, C, H, W = x.shape
    Cg = gating.shape[1]
    Hh, Wh = H // 2, W // 2
    HW, HhWh = H * W, Hh * Wh
    assert gating.shape == (N, Cg, Hh, Wh)

    # Free contiguous reshapes; channel-major compute needs no transposes at all.
    x_cm = x.reshape(N, C, HW).astype(jnp.float32)
    g_cm = gating.reshape(N, Cg, HhWh).astype(jnp.float32)

    # PyTorch Conv2d 1x1 weights [Cout, Cin, 1, 1] already match channel-major matmul.
    tw = params["theta_w"].reshape(C, C).astype(jnp.bfloat16)        # [C,  C]
    pw = params["phi_w"].reshape(C, Cg).astype(jnp.bfloat16)         # [C, Cg]
    b = (params["theta_b"] + params["phi_b"]).reshape(C, 1).astype(jnp.float32)
    psw = params["psi_w"].reshape(C, 1).astype(jnp.float32)
    psb = params["psi_b"].reshape(1, 1).astype(jnp.float32)

    # 0/1 selection matrix implementing x[:, :, ::2, ::2] on the flattened H*W axis.
    hh = jnp.arange(HhWh) // Wh
    ww = jnp.arange(HhWh) % Wh
    src = (2 * hh) * W + 2 * ww
    sel = jnp.zeros((HW, HhWh), jnp.float32).at[src, jnp.arange(HhWh)].set(1.0)
    sel = sel.astype(jnp.bfloat16)                                   # exact 0/1

    # Transposed Kronecker bilinear-upsample matrix: gate_row = s_row @ Ut.
    ut = jnp.kron(_bilinear_matrix(Hh), _bilinear_matrix(Wh)).T.astype(jnp.float32)

    flops = N * 2 * (C * HW * HhWh + C * C * HhWh + C * Cg * HhWh + HhWh * HW)
    bytes_accessed = (x_cm.size * 4 + g_cm.size * 4 + N * C * HW * 4
                      + tw.size * 2 + pw.size * 2 + sel.size * 2
                      + (b.size + psw.size + psb.size + ut.size) * 4)
    cost = pl.CostEstimate(flops=flops, transcendentals=N * HhWh,
                           bytes_accessed=bytes_accessed)

    out = pl.pallas_call(
        _attention_kernel,
        out_shape=jax.ShapeDtypeStruct((N, C, HW), jnp.float32),
        grid=(N,),
        in_specs=[
            pl.BlockSpec((1, C, HW), lambda n: (n, 0, 0)),      # x   (channel-major)
            pl.BlockSpec((1, Cg, HhWh), lambda n: (n, 0, 0)),   # gating
            pl.BlockSpec((C, C), lambda n: (0, 0)),             # theta weight
            pl.BlockSpec((C, Cg), lambda n: (0, 0)),            # phi weight
            pl.BlockSpec((C, 1), lambda n: (0, 0)),             # fused bias (column)
            pl.BlockSpec((C, 1), lambda n: (0, 0)),             # psi weight (column)
            pl.BlockSpec((1, 1), lambda n: (0, 0)),             # psi bias
            pl.BlockSpec((HW, HhWh), lambda n: (0, 0)),         # stride-2 selection
            pl.BlockSpec((HhWh, HW), lambda n: (0, 0)),         # upsample matrix^T
        ],
        out_specs=pl.BlockSpec((1, C, HW), lambda n: (n, 0, 0)),
        compiler_params=pltpu.CompilerParams(dimension_semantics=("parallel",)),
        cost_estimate=cost,
    )(x_cm, g_cm, tw, pw, b, psw, psb, sel, ut)

    return out.reshape(N, C, H, W)                   # free reshape; already NCHW


# ----------------------------------------------------------------------------
# Pure-JAX reference (for correctness check)
# ----------------------------------------------------------------------------
def attention_block_ref(params, x, gating):
    N, C, H, W = x.shape
    Cg = gating.shape[1]
    Hh, Wh = H // 2, W // 2
    theta = jnp.einsum("nchw,oc->nohw", x[:, :, ::2, ::2],
                       params["theta_w"].reshape(C, C)) + params["theta_b"].reshape(1, C, 1, 1)
    phi = jnp.einsum("nchw,oc->nohw", gating,
                     params["phi_w"].reshape(C, Cg)) + params["phi_b"].reshape(1, C, 1, 1)
    add = jnp.maximum(theta + phi, 0.0)
    psi = jnp.einsum("nchw,oc->nohw", add,
                     params["psi_w"].reshape(1, C)) + params["psi_b"].reshape(1, 1, 1, 1)
    s = jax.nn.sigmoid(psi)                                      # [N,1,Hh,Wh]
    Uh = _bilinear_matrix(Hh)
    Uw = _bilinear_matrix(Wh)
    up = jnp.einsum("ah,nchw,bw->ncab", Uh, s, Uw)               # [N,1,H,W]
    return up * x


# ----------------------------------------------------------------------------
if __name__ == "__main__":
    IN_CH, GAT_CH = 128, 256        # lane-dense channel counts (multiples of 128)
    N, H, W = 2, 16, 16

    key = jax.random.PRNGKey(0)
    ks = iter(jax.random.split(key, 16))
    params = {
        "theta_w": jax.random.normal(next(ks), (IN_CH, IN_CH, 1, 1), jnp.float32)
                   / jnp.sqrt(float(IN_CH)),
        "theta_b": 0.01 * jax.random.normal(next(ks), (IN_CH,), jnp.float32),
        "phi_w": jax.random.normal(next(ks), (IN_CH, GAT_CH, 1, 1), jnp.float32)
                 / jnp.sqrt(float(GAT_CH)),
        "phi_b": 0.01 * jax.random.normal(next(ks), (IN_CH,), jnp.float32),
        "psi_w": jax.random.normal(next(ks), (1, IN_CH, 1, 1), jnp.float32)
                 / jnp.sqrt(float(IN_CH)),
        "psi_b": 0.01 * jax.random.normal(next(ks), (1,), jnp.float32),
    }
    x = jax.random.normal(next(ks), (N, IN_CH, H, W), jnp.float32)
    gating = jax.random.normal(next(ks), (N, GAT_CH, H // 2, W // 2), jnp.float32)

    fwd = jax.jit(attention_block)
    y = jax.block_until_ready(fwd(params, x, gating))
    y_ref = jax.block_until_ready(jax.jit(attention_block_ref)(params, x, gating))

    assert y.shape == (N, IN_CH, H, W), y.shape
    assert bool(jnp.all(jnp.isfinite(y)))
    max_err = float(jnp.max(jnp.abs(y - y_ref)))
    assert max_err < 5e-2, max_err   # bf16-operand MXU tolerance
    print("KERNEL_OK")
</pallas_src>

<mosaic_0001>
module attributes {stable_mosaic.version = 11 : i64} {
  func.func private @main(%arg0: i32) attributes {dimension_semantics = [#tpu.dimension_semantics<core_parallel>], iteration_bounds = array<i64: 2>, tpu.core_type = #tpu.core_type<sc_scalar_subcore>, window_params = []} {
    return
  }
}

module attributes {stable_mosaic.version = 11 : i64} {
  func.func private @main(%arg0: i32) attributes {dimension_semantics = [#tpu.dimension_semantics<core_parallel>], iteration_bounds = array<i64: 2>, tpu.core_type = #tpu.core_type<sc_scalar_subcore>, window_params = []} {
    return
  }
}

module attributes {stable_mosaic.version = 11 : i64} {
  func.func @_attention_kernel(%arg0: i32, %arg1: memref<1x128x256xf32, #tpu.memory_space<vmem>>, %arg2: memref<1x256x64xf32, #tpu.memory_space<vmem>>, %arg3: memref<128x128xbf16, #tpu.memory_space<vmem>>, %arg4: memref<128x256xbf16, #tpu.memory_space<vmem>>, %arg5: memref<128x1xf32, #tpu.memory_space<vmem>>, %arg6: memref<128x1xf32, #tpu.memory_space<vmem>>, %arg7: memref<1x1xf32, #tpu.memory_space<vmem>>, %arg8: memref<256x64xbf16, #tpu.memory_space<vmem>>, %arg9: memref<64x256xf32, #tpu.memory_space<vmem>>, %arg10: memref<1x128x256xf32, #tpu.memory_space<vmem>>) attributes {dimension_semantics = [#tpu.dimension_semantics<parallel>], iteration_bounds = array<i64: 2>, scalar_prefetch = 0 : i64, scratch_operands = 0 : i64, tpu.core_type = #tpu.core_type<tc>, window_params = [{transform_indices = @transform_0, window_bounds = array<i64: 1, 128, 256>}, {transform_indices = @transform_1, window_bounds = array<i64: 1, 256, 64>}, {pipeline_mode = #tpu.pipeline_mode<synchronous>, transform_indices = @transform_2, window_bounds = array<i64: 128, 128>}, {pipeline_mode = #tpu.pipeline_mode<synchronous>, transform_indices = @transform_3, window_bounds = array<i64: 128, 256>}, {pipeline_mode = #tpu.pipeline_mode<synchronous>, transform_indices = @transform_4, window_bounds = array<i64: 128, 1>}, {pipeline_mode = #tpu.pipeline_mode<synchronous>, transform_indices = @transform_5, window_bounds = array<i64: 128, 1>}, {pipeline_mode = #tpu.pipeline_mode<synchronous>, transform_indices = @transform_6, window_bounds = array<i64: 1, 1>}, {pipeline_mode = #tpu.pipeline_mode<synchronous>, transform_indices = @transform_7, window_bounds = array<i64: 256, 64>}, {pipeline_mode = #tpu.pipeline_mode<synchronous>, transform_indices = @transform_8, window_bounds = array<i64: 64, 256>}, {transform_indices = @transform_9, window_bounds = array<i64: 1, 128, 256>}]} {
    %c0 = arith.constant 0 : index
    %c0_0 = arith.constant 0 : index
    %c0_1 = arith.constant 0 : index
    %0 = vector.load %arg1[%c0, %c0_0, %c0_1] : memref<1x128x256xf32, #tpu.memory_space<vmem>>, vector<1x128x256xf32>
    %1 = vector.shape_cast %0 : vector<1x128x256xf32> to vector<128x256xf32>
    %c0_2 = arith.constant 0 : index
    %c0_3 = arith.constant 0 : index
    %c0_4 = arith.constant 0 : index
    %2 = vector.load %arg2[%c0_2, %c0_3, %c0_4] : memref<1x256x64xf32, #tpu.memory_space<vmem>>, vector<1x256x64xf32>
    %3 = vector.shape_cast %2 : vector<1x256x64xf32> to vector<256x64xf32>
    %4 = arith.truncf %1 : vector<128x256xf32> to vector<128x256xbf16>
    %c0_5 = arith.constant 0 : index
    %c0_6 = arith.constant 0 : index
    %5 = vector.load %arg8[%c0_5, %c0_6] : memref<256x64xbf16, #tpu.memory_space<vmem>>, vector<256x64xbf16>
    %cst = arith.constant dense<0.000000e+00> : vector<128x64xf32>
    %6 = tpu.matmul %4, %5, %cst {dimension_numbers = #tpu.dot_dimension_numbers<[1], [0], [0], [1], [0, 0, 1, 1], [], []>} : vector<128x256xbf16>, vector<256x64xbf16>, vector<128x64xf32> -> vector<128x64xf32>
    %7 = arith.truncf %6 : vector<128x64xf32> to vector<128x64xbf16>
    %c0_7 = arith.constant 0 : index
    %c0_8 = arith.constant 0 : index
    %8 = vector.load %arg3[%c0_7, %c0_8] : memref<128x128xbf16, #tpu.memory_space<vmem>>, vector<128x128xbf16>
    %cst_9 = arith.constant dense<0.000000e+00> : vector<128x64xf32>
    %9 = tpu.matmul %8, %7, %cst_9 {dimension_numbers = #tpu.dot_dimension_numbers<[1], [0], [0], [1], [0, 0, 1, 1], [], []>} : vector<128x128xbf16>, vector<128x64xbf16>, vector<128x64xf32> -> vector<128x64xf32>
    %c0_10 = arith.constant 0 : index
    %c0_11 = arith.constant 0 : index
    %10 = vector.load %arg4[%c0_10, %c0_11] : memref<128x256xbf16, #tpu.memory_space<vmem>>, vector<128x256xbf16>
    %11 = arith.truncf %3 : vector<256x64xf32> to vector<256x64xbf16>
    %cst_12 = arith.constant dense<0.000000e+00> : vector<128x64xf32>
    %12 = tpu.matmul %10, %11, %cst_12 {dimension_numbers = #tpu.dot_dimension_numbers<[1], [0], [0], [1], [0, 0, 1, 1], [], []>} : vector<128x256xbf16>, vector<256x64xbf16>, vector<128x64xf32> -> vector<128x64xf32>
    %13 = arith.addf %9, %12 : vector<128x64xf32>
    %c0_13 = arith.constant 0 : index
    %c0_14 = arith.constant 0 : index
    %14 = vector.load %arg5[%c0_13, %c0_14] : memref<128x1xf32, #tpu.memory_space<vmem>>, vector<128x1xf32>
    %15 = vector.broadcast %14 : vector<128x1xf32> to vector<128x64xf32>
    %16 = arith.addf %13, %15 : vector<128x64xf32>
    %cst_15 = arith.constant 0.000000e+00 : f32
    %17 = vector.broadcast %cst_15 : f32 to vector<128x64xf32>
    %18 = arith.maximumf %16, %17 : vector<128x64xf32>
    %c0_16 = arith.constant 0 : index
    %c0_17 = arith.constant 0 : index
    %19 = vector.load %arg6[%c0_16, %c0_17] : memref<128x1xf32, #tpu.memory_space<vmem>>, vector<128x1xf32>
    %20 = vector.broadcast %19 : vector<128x1xf32> to vector<128x64xf32>
    %21 = arith.mulf %18, %20 : vector<128x64xf32>
    %cst_18 = arith.constant dense<0.000000e+00> : vector<64xf32>
    %22 = vector.multi_reduction <add>, %21, %cst_18 [0] : vector<128x64xf32> to vector<64xf32>
    %23 = vector.shape_cast %22 : vector<64xf32> to vector<1x64xf32>
    %c0_19 = arith.constant 0 : index
    %c0_20 = arith.constant 0 : index
    %24 = vector.load %arg7[%c0_19, %c0_20] : memref<1x1xf32, #tpu.memory_space<vmem>>, vector<1x1xf32>
    %25 = vector.broadcast %24 : vector<1x1xf32> to vector<1x64xf32>
    %26 = arith.addf %23, %25 : vector<1x64xf32>
    %27 = arith.negf %26 : vector<1x64xf32>
    %28 = math.exp %27 : vector<1x64xf32>
    %cst_21 = arith.constant 1.000000e+00 : f32
    %29 = vector.broadcast %cst_21 : f32 to vector<1x64xf32>
    %30 = arith.addf %29, %28 : vector<1x64xf32>
    %31 = arith.divf %29, %30 : vector<1x64xf32>
    %c0_22 = arith.constant 0 : index
    %c0_23 = arith.constant 0 : index
    %32 = vector.load %arg9[%c0_22, %c0_23] : memref<64x256xf32, #tpu.memory_space<vmem>>, vector<64x256xf32>
    %cst_24 = arith.constant dense<0.000000e+00> : vector<1x256xf32>
    %33 = tpu.matmul %31, %32, %cst_24 {dimension_numbers = #tpu.dot_dimension_numbers<[1], [0], [0], [1], [0, 0, 1, 1], [], []>} : vector<1x64xf32>, vector<64x256xf32>, vector<1x256xf32> -> vector<1x256xf32>
    %34 = vector.broadcast %33 : vector<1x256xf32> to vector<128x256xf32>
    %35 = arith.mulf %1, %34 : vector<128x256xf32>
    %c0_25 = arith.constant 0 : index
    %c0_26 = arith.constant 0 : index
    %c0_27 = arith.constant 0 : index
    %36 = vector.load %arg10[%c0_25, %c0_26, %c0_27] : memref<1x128x256xf32, #tpu.memory_space<vmem>>, vector<1x128x256xf32>
    %37 = vector.shape_cast %36 : vector<1x128x256xf32> to vector<128x256xf32>
    %38 = vector.shape_cast %35 : vector<128x256xf32> to vector<1x128x256xf32>
    tpu.vector_store %arg10[%c0_25, %c0_26, %c0_27], %38 {strides = array<i32>} : memref<1x128x256xf32, #tpu.memory_space<vmem>>, vector<1x128x256xf32>,
    return
  }
  func.func @transform_0(%arg0: i32) -> (i32, i32, i32) {
    %c0_i32 = arith.constant 0 : i32
    %c0_i32_0 = arith.constant 0 : i32
    %c0_i32_1 = arith.constant 0 : i32
    return %arg0, %c0_i32, %c0_i32_0 : i32, i32, i32
  }
  func.func @transform_1(%arg0: i32) -> (i32, i32, i32) {
    %c0_i32 = arith.constant 0 : i32
    %c0_i32_0 = arith.constant 0 : i32
    %c0_i32_1 = arith.constant 0 : i32
    return %arg0, %c0_i32, %c0_i32_0 : i32, i32, i32
  }
  func.func @transform_2(%arg0: i32) -> (i32, i32) {
    %c0_i32 = arith.constant 0 : i32
    %c0_i32_0 = arith.constant 0 : i32
    %c0_i32_1 = arith.constant 0 : i32
    return %c0_i32, %c0_i32_0 : i32, i32
  }
  func.func @transform_3(%arg0: i32) -> (i32, i32) {
    %c0_i32 = arith.constant 0 : i32
    %c0_i32_0 = arith.constant 0 : i32
    %c0_i32_1 = arith.constant 0 : i32
    return %c0_i32, %c0_i32_0 : i32, i32
  }
  func.func @transform_4(%arg0: i32) -> (i32, i32) {
    %c0_i32 = arith.constant 0 : i32
    %c0_i32_0 = arith.constant 0 : i32
    %c0_i32_1 = arith.constant 0 : i32
    return %c0_i32, %c0_i32_0 : i32, i32
  }
  func.func @transform_5(%arg0: i32) -> (i32, i32) {
    %c0_i32 = arith.constant 0 : i32
    %c0_i32_0 = arith.constant 0 : i32
    %c0_i32_1 = arith.constant 0 : i32
    return %c0_i32, %c0_i32_0 : i32, i32
  }
  func.func @transform_6(%arg0: i32) -> (i32, i32) {
    %c0_i32 = arith.constant 0 : i32
    %c0_i32_0 = arith.constant 0 : i32
    %c0_i32_1 = arith.constant 0 : i32
    return %c0_i32, %c0_i32_0 : i32, i32
  }
  func.func @transform_7(%arg0: i32) -> (i32, i32) {
    %c0_i32 = arith.constant 0 : i32
    %c0_i32_0 = arith.constant 0 : i32
    %c0_i32_1 = arith.constant 0 : i32
    return %c0_i32, %c0_i32_0 : i32, i32
  }
  func.func @transform_8(%arg0: i32) -> (i32, i32) {
    %c0_i32 = arith.constant 0 : i32
    %c0_i32_0 = arith.constant 0 : i32
    %c0_i32_1 = arith.constant 0 : i32
    return %c0_i32, %c0_i32_0 : i32, i32
  }
  func.func @transform_9(%arg0: i32) -> (i32, i32, i32) {
    %c0_i32 = arith.constant 0 : i32
    %c0_i32_0 = arith.constant 0 : i32
    %c0_i32_1 = arith.constant 0 : i32
    return %arg0, %c0_i32, %c0_i32_0 : i32, i32, i32
  }
}

</mosaic_0001>

<llo_original>
// kernel: attention_block.1
$region0: #{attention_block.1}
  #allocation0 [shape = 'u32[]', space=smem, size = 0x4, offset = 0x4, fixed_abs, tag = 'smem constant byte address 0x4 - core index']
  #allocation1 [shape = 'u32[144,128]{1,0:T(1,128)}', space=vmem, size = 0x12000, scoped, tag = 'internal scratch']
  #allocation2 [shape = 'f32[1,1]{1,0:T(1,128)S(1)}', space=vmem, size = 0x200, scoped, tag = 'scoped memory for attention_block.1']
  %s0 = inlined_call_operand.vmem [shape: f32[2,128,256], index: 0, kind: input, shape index: {}]
  %s1 = inlined_call_operand.vmem [shape: f32[2,256,64], index: 1, kind: input, shape index: {}]
  %s2 = inlined_call_operand.vmem [shape: bf16[128,128], index: 2, kind: input, shape index: {}]
  %s3 = inlined_call_operand.vmem [shape: bf16[128,256], index: 3, kind: input, shape index: {}]
  %s4 = inlined_call_operand.vmem [shape: f32[128,1], index: 4, kind: input, shape index: {}]
  %s5 = inlined_call_operand.vmem [shape: f32[128,1], index: 5, kind: input, shape index: {}]
  %s6 = inlined_call_operand.<no memory space> [shape: f32[1,1], index: 6, kind: input, shape index: {}]
  %s7 = inlined_call_operand.vmem [shape: bf16[256,64], index: 7, kind: input, shape index: {}]
  %s8 = inlined_call_operand.vmem [shape: f32[64,256], index: 8, kind: input, shape index: {}]
  %s9 = inlined_call_operand.vmem [shape: f32[2,128,256], index: 9, kind: output, shape index: {}]
  %s10 = sld [smem:[#allocation0]]
  $region69: #{attention_block.1} parent=0
    _
  %s12 = ssub.s32 1, %s10
  %s13 = scalar_select 0, %s12, %s10
  %v14 = vstv %s6
  %15 = vst [vmem:[#allocation2] sm:$0x1] %v14
  loop: start=0, step=1, limit=4
  $region2: #{attention_block.1} parent=0 // loop_pre_header
    _
  $region3: #{attention_block.1} parent=0 // loop_header
    %s17 = sphi 0, %s21
    %p18 = scmp.ge.s32.totalorder %s17, 4
    %s27 = sphi 0, %s29
    %s30 = sphi 0, %s27
    %s31 = sphi 0, %s30
    %s47 = sphi 0, %s31
    %s53 = sphi 0, %s55
    %s56 = sphi 0, %s53
    %s57 = sphi 0, %s56
    %s73 = sphi 0, %s57
    %s77 = sphi 0, %s77
    %s79 = sphi 0, %s77
    %s80 = sphi 0, %s79
    %s94 = sphi 0, %s80
    %s98 = sphi 0, %s98
    %s100 = sphi 0, %s98
    %s101 = sphi 0, %s100
    %s115 = sphi 0, %s101
    %s119 = sphi 0, %s119
    %s121 = sphi 0, %s119
    %s122 = sphi 0, %s121
    %s136 = sphi 0, %s122
    %s140 = sphi 0, %s140
    %s142 = sphi 0, %s140
    %s143 = sphi 0, %s142
    %s157 = sphi 0, %s143
    %s161 = sphi 0, %s161
    %s163 = sphi 0, %s161
    %s164 = sphi 0, %s163
    %s178 = sphi 0, %s164
    %s182 = sphi 0, %s182
    %s184 = sphi 0, %s182
    %s185 = sphi 0, %s184
    %s199 = sphi 0, %s185
    %s203 = sphi 0, %s203
    %s205 = sphi 0, %s203
    %s206 = sphi 0, %s205
    %s220 = sphi 0, %s206
    %s226 = sphi 0, %s228
    %s229 = sphi 0, %s226
    %s230 = sphi 0, %s229
    %s246 = sphi 0, %s230
  $region4: #{attention_block.1} parent=0 // loop_header_branch
    %20 = sbr.rel (%p18) target = $region8
  $region5: #{attention_block.1} parent=0 // loop_body
    %s22 = ssub.s32 %s17, 1
    %s23 = ssub.s32 %s17, 2
    %s24 = sadd.s32 %s17, 1
    %s25 = ssub.s32 %s17, %s24
    %p26 = scmp.eq.s32.totalorder %s25, 0
    %s28 = sadd.s32 %s27, 1
    %s29 = scalar_select %p26, %s27, %s28
    %p32 = pneg %p26
    %p33 = scmp.eq.s32.totalorder %s17, 1
    %p34 = por %p32, %p33
    %p35 = scmp.ne.s32.totalorder %s27, %s30
    %p36 = scmp.eq.s32.totalorder %s17, 0
    %p37 = por %p35, %p36
    %p38 = scmp.ne.s32.totalorder %s27, %s30
    %p39 = scmp.eq.s32.totalorder %s22, 1
    %p40 = por %p38, %p39
    %p41 = scmp.ne.s32.totalorder %s30, %s31
    %p42 = scmp.eq.s32.totalorder %s22, 0
    %p43 = por %p41, %p42
    %p44 = scmp.ne.s32.totalorder %s30, %s31
    %p45 = scmp.eq.s32.totalorder %s23, 1
    %p46 = por %p44, %p45
    %p48 = scmp.ne.s32.totalorder %s31, %s47
    %p49 = scmp.eq.s32.totalorder %s23, 0
    %p50 = por %p48, %p49
    %s51 = ssub.s32 %s17, %s24
    %p52 = scmp.eq.s32.totalorder %s51, 0
    %s54 = sadd.s32 %s53, 1
    %s55 = scalar_select %p52, %s53, %s54
    %p58 = pneg %p52
    %p59 = scmp.eq.s32.totalorder %s17, 1
    %p60 = por %p58, %p59
    %p61 = scmp.ne.s32.totalorder %s53, %s56
    %p62 = scmp.eq.s32.totalorder %s17, 0
    %p63 = por %p61, %p62
    %p64 = scmp.ne.s32.totalorder %s53, %s56
    %p65 = scmp.eq.s32.totalorder %s22, 1
    %p66 = por %p64, %p65
    %p67 = scmp.ne.s32.totalorder %s56, %s57
    %p68 = scmp.eq.s32.totalorder %s22, 0
    %p69 = por %p67, %p68
    %p70 = scmp.ne.s32.totalorder %s56, %s57
    %p71 = scmp.eq.s32.totalorder %s23, 1
    %p72 = por %p70, %p71
    %p74 = scmp.ne.s32.totalorder %s57, %s73
    %p75 = scmp.eq.s32.totalorder %s23, 0
    %p76 = por %p74, %p75
    %s78 = sadd.s32 %s77, 1
    %p81 = scmp.eq.s32.totalorder %s17, 1
    %p82 = scmp.ne.s32.totalorder %s77, %s79
    %p83 = scmp.eq.s32.totalorder %s17, 0
    %p84 = por %p82, %p83
    %p85 = scmp.ne.s32.totalorder %s77, %s79
    %p86 = scmp.eq.s32.totalorder %s22, 1
    %p87 = por %p85, %p86
    %p88 = scmp.ne.s32.totalorder %s79, %s80
    %p89 = scmp.eq.s32.totalorder %s22, 0
    %p90 = por %p88, %p89
    %p91 = scmp.ne.s32.totalorder %s79, %s80
    %p92 = scmp.eq.s32.totalorder %s23, 1
    %p93 = por %p91, %p92
    %p95 = scmp.ne.s32.totalorder %s80, %s94
    %p96 = scmp.eq.s32.totalorder %s23, 0
    %p97 = por %p95, %p96
    %s99 = sadd.s32 %s98, 1
    %p102 = scmp.eq.s32.totalorder %s17, 1
    %p103 = scmp.ne.s32.totalorder %s98, %s100
    %p104 = scmp.eq.s32.totalorder %s17, 0
    %p105 = por %p103, %p104
    %p106 = scmp.ne.s32.totalorder %s98, %s100
    %p107 = scmp.eq.s32.totalorder %s22, 1
    %p108 = por %p106, %p107
    %p109 = scmp.ne.s32.totalorder %s100, %s101
    %p110 = scmp.eq.s32.totalorder %s22, 0
    %p111 = por %p109, %p110
    %p112 = scmp.ne.s32.totalorder %s100, %s101
    %p113 = scmp.eq.s32.totalorder %s23, 1
    %p114 = por %p112, %p113
    %p116 = scmp.ne.s32.totalorder %s101, %s115
    %p117 = scmp.eq.s32.totalorder %s23, 0
    %p118 = por %p116, %p117
    %s120 = sadd.s32 %s119, 1
    %p123 = scmp.eq.s32.totalorder %s17, 1
    %p124 = scmp.ne.s32.totalorder %s119, %s121
    %p125 = scmp.eq.s32.totalorder %s17, 0
    %p126 = por %p124, %p125
    %p127 = scmp.ne.s32.totalorder %s119, %s121
    %p128 = scmp.eq.s32.totalorder %s22, 1
    %p129 = por %p127, %p128
    %p130 = scmp.ne.s32.totalorder %s121, %s122
    %p131 = scmp.eq.s32.totalorder %s22, 0
    %p132 = por %p130, %p131
    %p133 = scmp.ne.s32.totalorder %s121, %s122
    %p134 = scmp.eq.s32.totalorder %s23, 1
    %p135 = por %p133, %p134
    %p137 = scmp.ne.s32.totalorder %s122, %s136
    %p138 = scmp.eq.s32.totalorder %s23, 0
    %p139 = por %p137, %p138
    %s141 = sadd.s32 %s140, 1
    %p144 = scmp.eq.s32.totalorder %s17, 1
    %p145 = scmp.ne.s32.totalorder %s140, %s142
    %p146 = scmp.eq.s32.totalorder %s17, 0
    %p147 = por %p145, %p146
    %p148 = scmp.ne.s32.totalorder %s140, %s142
    %p149 = scmp.eq.s32.totalorder %s22, 1
    %p150 = por %p148, %p149
    %p151 = scmp.ne.s32.totalorder %s142, %s143
    %p152 = scmp.eq.s32.totalorder %s22, 0
    %p153 = por %p151, %p152
    %p154 = scmp.ne.s32.totalorder %s142, %s143
    %p155 = scmp.eq.s32.totalorder %s23, 1
    %p156 = por %p154, %p155
    %p158 = scmp.ne.s32.totalorder %s143, %s157
    %p159 = scmp.eq.s32.totalorder %s23, 0
    %p160 = por %p158, %p159
    %s162 = sadd.s32 %s161, 1
    %p165 = scmp.eq.s32.totalorder %s17, 1
    %p166 = scmp.ne.s32.totalorder %s161, %s163
    %p167 = scmp.eq.s32.totalorder %s17, 0
    %p168 = por %p166, %p167
    %p169 = scmp.ne.s32.totalorder %s161, %s163
    %p170 = scmp.eq.s32.totalorder %s22, 1
    %p171 = por %p169, %p170
    %p172 = scmp.ne.s32.totalorder %s163, %s164
    %p173 = scmp.eq.s32.totalorder %s22, 0
    %p174 = por %p172, %p173
    %p175 = scmp.ne.s32.totalorder %s163, %s164
    %p176 = scmp.eq.s32.totalorder %s23, 1
    %p177 = por %p175, %p176
    %p179 = scmp.ne.s32.totalorder %s164, %s178
    %p180 = scmp.eq.s32.totalorder %s23, 0
    %p181 = por %p179, %p180
    %s183 = sadd.s32 %s182, 1
    %p186 = scmp.eq.s32.totalorder %s17, 1
    %p187 = scmp.ne.s32.totalorder %s182, %s184
    %p188 = scmp.eq.s32.totalorder %s17, 0
    %p189 = por %p187, %p188
    %p190 = scmp.ne.s32.totalorder %s182, %s184
    %p191 = scmp.eq.s32.totalorder %s22, 1
    %p192 = por %p190, %p191
    %p193 = scmp.ne.s32.totalorder %s184, %s185
    %p194 = scmp.eq.s32.totalorder %s22, 0
    %p195 = por %p193, %p194
    %p196 = scmp.ne.s32.totalorder %s184, %s185
    %p197 = scmp.eq.s32.totalorder %s23, 1
    %p198 = por %p196, %p197
    %p200 = scmp.ne.s32.totalorder %s185, %s199
    %p201 = scmp.eq.s32.totalorder %s23, 0
    %p202 = por %p200, %p201
    %s204 = sadd.s32 %s203, 1
    %p207 = scmp.eq.s32.totalorder %s17, 1
    %p208 = scmp.ne.s32.totalorder %s203, %s205
    %p209 = scmp.eq.s32.totalorder %s17, 0
    %p210 = por %p208, %p209
    %p211 = scmp.ne.s32.totalorder %s203, %s205
    %p212 = scmp.eq.s32.totalorder %s22, 1
    %p213 = por %p211, %p212
    %p214 = scmp.ne.s32.totalorder %s205, %s206
    %p215 = scmp.eq.s32.totalorder %s22, 0
    %p216 = por %p214, %p215
    %p217 = scmp.ne.s32.totalorder %s205, %s206
    %p218 = scmp.eq.s32.totalorder %s23, 1
    %p219 = por %p217, %p218
    %p221 = scmp.ne.s32.totalorder %s206, %s220
    %p222 = scmp.eq.s32.totalorder %s23, 0
    %p223 = por %p221, %p222
    %s224 = ssub.s32 %s17, %s24
    %p225 = scmp.eq.s32.totalorder %s224, 0
    %s227 = sadd.s32 %s226, 1
    %s228 = scalar_select %p225, %s226, %s227
    %p231 = pneg %p225
    %p232 = scmp.eq.s32.totalorder %s17, 1
    %p233 = por %p231, %p232
    %p234 = scmp.ne.s32.totalorder %s226, %s229
    %p235 = scmp.eq.s32.totalorder %s17, 0
    %p236 = por %p234, %p235
    %p237 = scmp.ne.s32.totalorder %s226, %s229
    %p238 = scmp.eq.s32.totalorder %s22, 1
    %p239 = por %p237, %p238
    %p240 = scmp.ne.s32.totalorder %s229, %s230
    %p241 = scmp.eq.s32.totalorder %s22, 0
    %p242 = por %p240, %p241
    %p243 = scmp.ne.s32.totalorder %s229, %s230
    %p244 = scmp.eq.s32.totalorder %s23, 1
    %p245 = por %p243, %p244
    %p247 = scmp.ne.s32.totalorder %s230, %s246
    %p248 = scmp.eq.s32.totalorder %s23, 0
    %p249 = por %p247, %p248
    %p250 = scmp.le.s32.totalorder 1, %s17
    %p251 = scmp.lt.s32.totalorder %s17, 3
    %p252 = pnand %p250, %p251
    %p253 = pneg %p252
    // Predicated region
    $region9: #{attention_block.1} parent=5 // pred_check
      _
    $region10: #{attention_block.1} parent=5 // pred_check_branch
      %255 = sbr.rel (%p252) target = $region12
    $region11: #{attention_block.1} parent=5 // pred_region
      %s256 = ssub.s32 %s17, 1
      // Predicated region
      $region13: #{attention_block.1} parent=11 // pred_check
        %p257 = pneg %p90
      $region14: #{attention_block.1} parent=11 // pred_check_branch
        %259 = sbr.rel (%p257) target = $region16
      $region15: #{attention_block.1} parent=11 // pred_region
        _
      $region16: #{attention_block.1} parent=11 // pred_fallthru
        _
      // Predicated region
      $region17: #{attention_block.1} parent=11 // pred_check
        %p260 = pneg %p111
      $region18: #{attention_block.1} parent=11 // pred_check_branch
        %262 = sbr.rel (%p260) target = $region20
      $region19: #{attention_block.1} parent=11 // pred_region
        _
      $region20: #{attention_block.1} parent=11 // pred_fallthru
        _
      // Predicated region
      $region21: #{attention_block.1} parent=11 // pred_check
        %p263 = pneg %p132
      $region22: #{attention_block.1} parent=11 // pred_check_branch
        %265 = sbr.rel (%p263) target = $region24
      $region23: #{attention_block.1} parent=11 // pred_region
        _
      $region24: #{attention_block.1} parent=11 // pred_fallthru
        _
      // Predicated region
      $region25: #{attention_block.1} parent=11 // pred_check
        %p266 = pneg %p153
      $region26: #{attention_block.1} parent=11 // pred_check_branch
        %268 = sbr.rel (%p266) target = $region28
      $region27: #{attention_block.1} parent=11 // pred_region
        _
      $region28: #{attention_block.1} parent=11 // pred_fallthru
        _
      // Predicated region
      $region29: #{attention_block.1} parent=11 // pred_check
        %p269 = pneg %p174
      $region30: #{attention_block.1} parent=11 // pred_check_branch
        %271 = sbr.rel (%p269) target = $region32
      $region31: #{attention_block.1} parent=11 // pred_region
        _
      $region32: #{attention_block.1} parent=11 // pred_fallthru
        _
      // Predicated region
      $region33: #{attention_block.1} parent=11 // pred_check
        %p272 = pneg %p195
      $region34: #{attention_block.1} parent=11 // pred_check_branch
        %274 = sbr.rel (%p272) target = $region36
      $region35: #{attention_block.1} parent=11 // pred_region
        _
      $region36: #{attention_block.1} parent=11 // pred_fallthru
        _
      // Predicated region
      $region37: #{attention_block.1} parent=11 // pred_check
        %p275 = pneg %p216
      $region38: #{attention_block.1} parent=11 // pred_check_branch
        %277 = sbr.rel (%p275) target = $region40
      $region39: #{attention_block.1} parent=11 // pred_region
        _
      $region40: #{attention_block.1} parent=11 // pred_fallthru
        _
    $region12: #{attention_block.1} parent=5 // pred_fallthru
      _
    %p278 = scmp.lt.s32.totalorder %s17, 2
    // Predicated region
    $region41: #{attention_block.1} parent=5 // pred_check
      %p279 = pneg %p278
    $region42: #{attention_block.1} parent=5 // pred_check_branch
      %281 = sbr.rel (%p279) target = $region44
    $region43: #{attention_block.1} parent=5 // pred_region
      // Predicated region
      $region45: #{attention_block.1} parent=43 // pred_check
        %p282 = pneg %p37
      $region46: #{attention_block.1} parent=43 // pred_check_branch
        %284 = sbr.rel (%p282) target = $region48
      $region47: #{attention_block.1} parent=43 // pred_region
        %p285 = scmp.lt.s32.totalorder %s17, 1
        %s286 = scalar_select %p285, %s17, 1
        %s287 = smul.addr %s286, 32
        %s288 = smul.addr %s287, 8
        %s289 = scalar_lea.vmem %s0, %s288
      $region48: #{attention_block.1} parent=43 // pred_fallthru
        _
      // Predicated region
      $region49: #{attention_block.1} parent=43 // pred_check
        %p290 = pneg %p63
      $region50: #{attention_block.1} parent=43 // pred_check_branch
        %292 = sbr.rel (%p290) target = $region52
      $region51: #{attention_block.1} parent=43 // pred_region
        %p293 = scmp.lt.s32.totalorder %s17, 1
        %s294 = scalar_select %p293, %s17, 1
        %s295 = smul.addr %s294, 32
        %s296 = smul.addr %s295, 8
        %s297 = scalar_lea.vmem %s1, %s296
      $region52: #{attention_block.1} parent=43 // pred_fallthru
        _
    $region44: #{attention_block.1} parent=5 // pred_fallthru
      _
    %p298 = scmp.le.s32.totalorder 1, %s17
    %p299 = scmp.lt.s32.totalorder %s17, 3
    %p300 = pnand %p298, %p299
    %p301 = pneg %p300
    // Predicated region
    $region53: #{attention_block.1} parent=5 // pred_check
      _
    $region54: #{attention_block.1} parent=5 // pred_check_branch
      %303 = sbr.rel (%p300) target = $region56
    $region55: #{attention_block.1} parent=5 // pred_region
      %s304 = ssub.s32 %s17, 1
      %p305 = scmp.lt.s32.totalorder %s22, 1
      %s306 = scalar_select %p305, %s22, 1
      %s307 = smul.addr %s306, 32
      %s308 = smul.addr %s307, 8
      %s309 = scalar_lea.vmem %s0, %s308
      %p310 = pneg %p43
      %p311 = pneg %p40
      %p312 = scmp.lt.s32.totalorder %s22, 1
      %s313 = scalar_select %p312, %s22, 1
      %s314 = smul.addr %s313, 32
      %s315 = smul.addr %s314, 8
      %s316 = scalar_lea.vmem %s1, %s315
      %p317 = pneg %p69
      %p318 = pneg %p66
      %p319 = pneg %p90
      %p320 = pneg %p87
      %p321 = pneg %p111
      %p322 = pneg %p108
      %p323 = pneg %p132
      %p324 = pneg %p129
      %p325 = pneg %p153
      %p326 = pneg %p150
      %p327 = pneg %p174
      %p328 = pneg %p171
      %p329 = pneg %p195
      %p330 = pneg %p192
      %p331 = pneg %p216
      %p332 = pneg %p213
      %p333 = pneg %p242
      %p334 = pneg %p239
      %p335 = scmp.lt.s32.totalorder %s22, 1
      %s336 = scalar_select %p335, %s22, 1
      %s337 = smul.addr %s336, 32
      %s338 = smul.addr %s337, 8
      %s339 = scalar_lea.vmem %s9, %s338
      %p340 = scmp.lt.s32.totalorder %s22, 1
      %s341 = scalar_select %p340, %s22, 1
      %s342 = smul.addr %s341, 32
      %s343 = smul.addr %s342, 8
      %s344 = scalar_lea.vmem %s0, %s343
      %p345 = scmp.lt.s32.totalorder %s22, 1
      %s346 = scalar_select %p345, %s22, 1
      %s347 = smul.addr %s346, 32
      %s348 = smul.addr %s347, 8
      %s349 = scalar_lea.vmem %s1, %s348
      %p350 = scmp.lt.s32.totalorder %s22, 1
      %s351 = scalar_select %p350, %s22, 1
      %s352 = smul.addr %s351, 32
      %s353 = smul.addr %s352, 8
      %s354 = scalar_lea.vmem %s9, %s353
      %v356 = vld [vmem:[%s344] sm:$0xff]
      %v357 = vld [vmem:[%s344 + $0x8] sm:$0xff]
      %v358 = vld [vmem:[%s344 + $0x10] sm:$0xff]
      %v359 = vld [vmem:[%s344 + $0x18] sm:$0xff]
      %v360 = vld [vmem:[%s344 + $0x20] sm:$0xff]
      %v361 = vld [vmem:[%s344 + $0x28] sm:$0xff]
      %v362 = vld [vmem:[%s344 + $0x30] sm:$0xff]
      %v363 = vld [vmem:[%s344 + $0x38] sm:$0xff]
      %v364 = vld [vmem:[%s344 + $0x40] sm:$0xff]
      %v365 = vld [vmem:[%s344 + $0x48] sm:$0xff]
      %v366 = vld [vmem:[%s344 + $0x50] sm:$0xff]
      %v367 = vld [vmem:[%s344 + $0x58] sm:$0xff]
      %v368 = vld [vmem:[%s344 + $0x60] sm:$0xff]
      %v369 = vld [vmem:[%s344 + $0x68] sm:$0xff]
      %v370 = vld [vmem:[%s344 + $0x70] sm:$0xff]
      %v371 = vld [vmem:[%s344 + $0x78] sm:$0xff]
      %v372 = vld [vmem:[%s344 + $0x80] sm:$0xff]
      %v373 = vld [vmem:[%s344 + $0x88] sm:$0xff]
      %v374 = vld [vmem:[%s344 + $0x90] sm:$0xff]
      %v375 = vld [vmem:[%s344 + $0x98] sm:$0xff]
      %v376 = vld [vmem:[%s344 + $0xa0] sm:$0xff]
      %v377 = vld [vmem:[%s344 + $0xa8] sm:$0xff]
      %v378 = vld [vmem:[%s344 + $0xb0] sm:$0xff]
      %v379 = vld [vmem:[%s344 + $0xb8] sm:$0xff]
      %v380 = vld [vmem:[%s344 + $0xc0] sm:$0xff]
      %v381 = vld [vmem:[%s344 + $0xc8] sm:$0xff]
      %v382 = vld [vmem:[%s344 + $0xd0] sm:$0xff]
      %v383 = vld [vmem:[%s344 + $0xd8] sm:$0xff]
      %v384 = vld [vmem:[%s344 + $0xe0] sm:$0xff]
      %v385 = vld [vmem:[%s344 + $0xe8] sm:$0xff]
      %v386 = vld [vmem:[%s344 + $0xf0] sm:$0xff]
      %v387 = vld [vmem:[%s344 + $0xf8] sm:$0xff]
      %v388 = vld [vmem:[%s349] sm:$0xff]
      %v389 = vld [vmem:[%s349 + $0x8] sm:$0xff]
      %v390 = vld [vmem:[%s349 + $0x10] sm:$0xff]
      %v391 = vld [vmem:[%s349 + $0x18] sm:$0xff]
      %v392 = vld [vmem:[%s349 + $0x20] sm:$0xff]
      %v393 = vld [vmem:[%s349 + $0x28] sm:$0xff]
      %v394 = vld [vmem:[%s349 + $0x30] sm:$0xff]
      %v395 = vld [vmem:[%s349 + $0x38] sm:$0xff]
      %v396 = vld [vmem:[%s349 + $0x40] sm:$0xff]
      %v397 = vld [vmem:[%s349 + $0x48] sm:$0xff]
      %v398 = vld [vmem:[%s349 + $0x50] sm:$0xff]
      %v399 = vld [vmem:[%s349 + $0x58] sm:$0xff]
      %v400 = vld [vmem:[%s349 + $0x60] sm:$0xff]
      %v401 = vld [vmem:[%s349 + $0x68] sm:$0xff]
      %v402 = vld [vmem:[%s349 + $0x70] sm:$0xff]
      %v403 = vld [vmem:[%s349 + $0x78] sm:$0xff]
      %v404 = vld [vmem:[%s349 + $0x80] sm:$0xff]
      %v405 = vld [vmem:[%s349 + $0x88] sm:$0xff]
      %v406 = vld [vmem:[%s349 + $0x90] sm:$0xff]
      %v407 = vld [vmem:[%s349 + $0x98] sm:$0xff]
      %v408 = vld [vmem:[%s349 + $0xa0] sm:$0xff]
      %v409 = vld [vmem:[%s349 + $0xa8] sm:$0xff]
      %v410 = vld [vmem:[%s349 + $0xb0] sm:$0xff]
      %v411 = vld [vmem:[%s349 + $0xb8] sm:$0xff]
      %v412 = vld [vmem:[%s349 + $0xc0] sm:$0xff]
      %v413 = vld [vmem:[%s349 + $0xc8] sm:$0xff]
      %v414 = vld [vmem:[%s349 + $0xd0] sm:$0xff]
      %v415 = vld [vmem:[%s349 + $0xd8] sm:$0xff]
      %v416 = vld [vmem:[%s349 + $0xe0] sm:$0xff]
      %v417 = vld [vmem:[%s349 + $0xe8] sm:$0xff]
      %v418 = vld [vmem:[%s349 + $0xf0] sm:$0xff]
      %v419 = vld [vmem:[%s349 + $0xf8] sm:$0xff]
      %v420 = vpack.c.bf16 %v358, %v356
      %v421 = vpack.c.bf16 %v359, %v357
      %v422 = vpack.c.bf16 %v362, %v360
      %v423 = vpack.c.bf16 %v363, %v361
      %v424 = vpack.c.bf16 %v366, %v364
      %v425 = vpack.c.bf16 %v367, %v365
      %v426 = vpack.c.bf16 %v370, %v368
      %v427 = vpack.c.bf16 %v371, %v369
      %v428 = vpack.c.bf16 %v374, %v372
      %v429 = vpack.c.bf16 %v375, %v373
      %v430 = vpack.c.bf16 %v378, %v376
      %v431 = vpack.c.bf16 %v379, %v377
      %v432 = vpack.c.bf16 %v382, %v380
      %v433 = vpack.c.bf16 %v383, %v381
      %v434 = vpack.c.bf16 %v386, %v384
      %v435 = vpack.c.bf16 %v387, %v385
      %v436 = vld [vmem:[%s7] sm:$0xf]
      %v437 = vld [vmem:[%s7 + $0x4] sm:$0xf]
      %v438 = vld [vmem:[%s7 + $0x8] sm:$0xf]
      %v439 = vld [vmem:[%s7 + $0xc] sm:$0xf]
      %v440 = vld [vmem:[%s7 + $0x10] sm:$0xf]
      %v441 = vld [vmem:[%s7 + $0x14] sm:$0xf]
      %v442 = vld [vmem:[%s7 + $0x18] sm:$0xf]
      %v443 = vld [vmem:[%s7 + $0x1c] sm:$0xf]
      %v444 = vld [vmem:[%s7 + $0x20] sm:$0xf]
      %v445 = vld [vmem:[%s7 + $0x24] sm:$0xf]
      %v446 = vld [vmem:[%s7 + $0x28] sm:$0xf]
      %v447 = vld [vmem:[%s7 + $0x2c] sm:$0xf]
      %v448 = vld [vmem:[%s7 + $0x30] sm:$0xf]
      %v449 = vld [vmem:[%s7 + $0x34] sm:$0xf]
      %v450 = vld [vmem:[%s7 + $0x38] sm:$0xf]
      %v451 = vld [vmem:[%s7 + $0x3c] sm:$0xf]
      %v452 = vld [vmem:[%s7 + $0x40] sm:$0xf]
      %v453 = vld [vmem:[%s7 + $0x44] sm:$0xf]
      %v454 = vld [vmem:[%s7 + $0x48] sm:$0xf]
      %v455 = vld [vmem:[%s7 + $0x4c] sm:$0xf]
      %v456 = vld [vmem:[%s7 + $0x50] sm:$0xf]
      %v457 = vld [vmem:[%s7 + $0x54] sm:$0xf]
      %v458 = vld [vmem:[%s7 + $0x58] sm:$0xf]
      %v459 = vld [vmem:[%s7 + $0x5c] sm:$0xf]
      %v460 = vld [vmem:[%s7 + $0x60] sm:$0xf]
      %v461 = vld [vmem:[%s7 + $0x64] sm:$0xf]
      %v462 = vld [vmem:[%s7 + $0x68] sm:$0xf]
      %v463 = vld [vmem:[%s7 + $0x6c] sm:$0xf]
      %v464 = vld [vmem:[%s7 + $0x70] sm:$0xf]
      %v465 = vld [vmem:[%s7 + $0x74] sm:$0xf]
      %v466 = vld [vmem:[%s7 + $0x78] sm:$0xf]
      %v467 = vld [vmem:[%s7 + $0x7c] sm:$0xf]
      %v500 = vunpack.c.l.b16 %v436
      %v501 = vunpack.c.l.b16 %v437
      %v502 = vunpack.c.l.b16 %v438
      %v503 = vunpack.c.l.b16 %v439
      %v504 = vunpack.c.l.b16 %v440
      %v505 = vunpack.c.l.b16 %v441
      %v506 = vunpack.c.l.b16 %v442
      %v507 = vunpack.c.l.b16 %v443
      %v508 = vunpack.c.l.b16 %v444
      %v509 = vunpack.c.l.b16 %v445
      %v510 = vunpack.c.l.b16 %v446
      %v511 = vunpack.c.l.b16 %v447
      %v512 = vunpack.c.l.b16 %v448
      %v513 = vunpack.c.l.b16 %v449
      %v514 = vunpack.c.l.b16 %v450
      %v515 = vunpack.c.l.b16 %v451
      %v516 = vunpack.c.l.b16 %v452
      %v517 = vunpack.c.l.b16 %v453
      %v518 = vunpack.c.l.b16 %v454
      %v519 = vunpack.c.l.b16 %v455
      %v520 = vunpack.c.l.b16 %v456
      %v521 = vunpack.c.l.b16 %v457
      %v522 = vunpack.c.l.b16 %v458
      %v523 = vunpack.c.l.b16 %v459
      %v524 = vunpack.c.l.b16 %v460
      %v525 = vunpack.c.l.b16 %v461
      %v526 = vunpack.c.l.b16 %v462
      %v527 = vunpack.c.l.b16 %v463
      %v528 = vunpack.c.l.b16 %v464
      %v529 = vunpack.c.l.b16 %v465
      %v530 = vunpack.c.l.b16 %v466
      %v531 = vunpack.c.l.b16 %v467
      %v532 = vpack.c.b16 %v501, %v500
      %v533 = vpack.c.b16 %v503, %v502
      %v534 = vpack.c.b16 %v505, %v504
      %v535 = vpack.c.b16 %v507, %v506
      %v536 = vpack.c.b16 %v509, %v508
      %v537 = vpack.c.b16 %v511, %v510
      %v538 = vpack.c.b16 %v513, %v512
      %v539 = vpack.c.b16 %v515, %v514
      %v540 = vpack.c.b16 %v517, %v516
      %v541 = vpack.c.b16 %v519, %v518
      %v542 = vpack.c.b16 %v521, %v520
      %v543 = vpack.c.b16 %v523, %v522
      %v544 = vpack.c.b16 %v525, %v524
      %v545 = vpack.c.b16 %v527, %v526
      %v546 = vpack.c.b16 %v529, %v528
      %v547 = vpack.c.b16 %v531, %v530
      %564 = vmatprep.subr.bf16.mxu0 0
      %565 = vmatpush1.bf16.msra.mxu0 %v532
      %566 = vmatprep.subr.bf16.mxu0 0
      %567 = vmatpush1.bf16.msra.mxu0 %v533
      %568 = vmatprep.subr.bf16.mxu0 0
      %569 = vmatpush1.bf16.msra.mxu0 %v534
      %570 = vmatprep.subr.bf16.mxu0 0
      %571 = vmatpush1.bf16.msra.mxu0 %v535
      %572 = vmatprep.subr.bf16.mxu0 0
      %573 = vmatpush1.bf16.msra.mxu0 %v536
      %574 = vmatprep.subr.bf16.mxu0 0
      %575 = vmatpush1.bf16.msra.mxu0 %v537
      %576 = vmatprep.subr.bf16.mxu0 0
      %577 = vmatpush1.bf16.msra.mxu0 %v538
      %578 = vmatprep.subr.bf16.mxu0 0
      %579 = vmatpush1.bf16.msra.mxu0 %v539
      %580 = vmatprep.subr.bf16.mxu0 0
      %581 = vmatpush1.bf16.msra.mxu0 %v540
      %582 = vmatprep.subr.bf16.mxu0 0
      %583 = vmatpush1.bf16.msra.mxu0 %v541
      %584 = vmatprep.subr.bf16.mxu0 0
      %585 = vmatpush1.bf16.msra.mxu0 %v542
      %586 = vmatprep.subr.bf16.mxu0 0
      %587 = vmatpush1.bf16.msra.mxu0 %v543
      %588 = vmatprep.subr.bf16.mxu0 0
      %589 = vmatpush1.bf16.msra.mxu0 %v544
      %590 = vmatprep.subr.bf16.mxu0 0
      %591 = vmatpush1.bf16.msra.mxu0 %v545
      %592 = vmatprep.subr.bf16.mxu0 0
      %593 = vmatpush1.bf16.msra.mxu0 %v546
      %594 = vmatprep.subr.bf16.mxu0 0
      %595 = vmatpush1.bf16.msra.mxu0 %v547
      %596 = vmatprep.mubr.bf16.mxu0 %v421
      %597 = vmatmul.mubr.bf16.gmra.mrb[0].mxu0 %v420
      %v598 = vpop.f32.mrb[0].mxu0
      %v599 = vadd.f32 0.0, %v598
      %v600 = vpop.f32.mrb[0].mxu0
      %v601 = vpop.f32.mrb[0].mxu0
      %v602 = vadd.f32 0.0, %v601
      %v603 = vpop.f32.mrb[0].mxu0
      %604 = vmatprep.mubr.bf16.mxu0 %v423
      %605 = vmatmul.mubr.bf16.gmra.mrb[0].mxu0 %v422
      %v606 = vpop.f32.mrb[0].mxu0
      %v607 = vadd.f32 0.0, %v606
      %v608 = vpop.f32.mrb[0].mxu0
      %v609 = vpop.f32.mrb[0].mxu0
      %v610 = vadd.f32 0.0, %v609
      %v611 = vpop.f32.mrb[0].mxu0
      %612 = vmatprep.mubr.bf16.mxu0 %v425
      %613 = vmatmul.mubr.bf16.gmra.mrb[0].mxu0 %v424
      %v614 = vpop.f32.mrb[0].mxu0
      %v615 = vadd.f32 0.0, %v614
      %v616 = vpop.f32.mrb[0].mxu0
      %v617 = vpop.f32.mrb[0].mxu0
      %v618 = vadd.f32 0.0, %v617
      %v619 = vpop.f32.mrb[0].mxu0
      %620 = vmatprep.mubr.bf16.mxu0 %v427
      %621 = vmatmul.mubr.bf16.gmra.mrb[0].mxu0 %v426
      %v622 = vpop.f32.mrb[0].mxu0
      %v623 = vadd.f32 0.0, %v622
      %v624 = vpop.f32.mrb[0].mxu0
      %v625 = vpop.f32.mrb[0].mxu0
      %v626 = vadd.f32 0.0, %v625
      %v627 = vpop.f32.mrb[0].mxu0
      %628 = vmatprep.mubr.bf16.mxu0 %v429
      %629 = vmatmul.mubr.bf16.gmra.mrb[0].mxu0 %v428
      %v630 = vpop.f32.mrb[0].mxu0
      %v631 = vadd.f32 0.0, %v630
      %v632 = vpop.f32.mrb[0].mxu0
      %v633 = vpop.f32.mrb[0].mxu0
      %v634 = vadd.f32 0.0, %v633
      %v635 = vpop.f32.mrb[0].mxu0
      %636 = vmatprep.mubr.bf16.mxu0 %v431
      %637 = vmatmul.mubr.bf16.gmra.mrb[0].mxu0 %v430
      %v638 = vpop.f32.mrb[0].mxu0
      %v639 = vadd.f32 0.0, %v638
      %v640 = vpop.f32.mrb[0].mxu0
      %v641 = vpop.f32.mrb[0].mxu0
      %v642 = vadd.f32 0.0, %v641
      %v643 = vpop.f32.mrb[0].mxu0
      %644 = vmatprep.mubr.bf16.mxu0 %v433
      %645 = vmatmul.mubr.bf16.gmra.mrb[0].mxu0 %v432
      %v646 = vpop.f32.mrb[0].mxu0
      %v647 = vadd.f32 0.0, %v646
      %v648 = vpop.f32.mrb[0].mxu0
      %v649 = vpop.f32.mrb[0].mxu0
      %v650 = vadd.f32 0.0, %v649
      %v651 = vpop.f32.mrb[0].mxu0
      %652 = vmatprep.mubr.bf16.mxu0 %v435
      %653 = vmatmul.mubr.bf16.gmra.mrb[0].mxu0 %v434
      %v654 = vpop.f32.mrb[0].mxu0
      %v655 = vadd.f32 0.0, %v654
      %v656 = vpop.f32.mrb[0].mxu0
      %v657 = vpop.f32.mrb[0].mxu0
      %v658 = vadd.f32 0.0, %v657
      %v659 = vpop.f32.mrb[0].mxu0
      %660 = vdwg.mxu0
      %v661 = vpack.c.bf16 %v602, %v599
      %v662 = vpack.c.bf16 %v610, %v607
      %v663 = vpack.c.bf16 %v618, %v615
      %v664 = vpack.c.bf16 %v626, %v623
      %v665 = vpack.c.bf16 %v634, %v631
      %v666 = vpack.c.bf16 %v642, %v639
      %v667 = vpack.c.bf16 %v650, %v647
      %v668 = vpack.c.bf16 %v658, %v655
      %v669 = vld [vmem:[%s2] sm:$0xf]
      %v670 = vld [vmem:[%s2 + $0x4] sm:$0xf]
      %v671 = vld [vmem:[%s2 + $0x8] sm:$0xf]
      %v672 = vld [vmem:[%s2 + $0xc] sm:$0xf]
      %v673 = vld [vmem:[%s2 + $0x10] sm:$0xf]
      %v674 = vld [vmem:[%s2 + $0x14] sm:$0xf]
      %v675 = vld [vmem:[%s2 + $0x18] sm:$0xf]
      %v676 = vld [vmem:[%s2 + $0x1c] sm:$0xf]
      %v677 = vld [vmem:[%s2 + $0x20] sm:$0xf]
      %v678 = vld [vmem:[%s2 + $0x24] sm:$0xf]
      %v679 = vld [vmem:[%s2 + $0x28] sm:$0xf]
      %v680 = vld [vmem:[%s2 + $0x2c] sm:$0xf]
      %v681 = vld [vmem:[%s2 + $0x30] sm:$0xf]
      %v682 = vld [vmem:[%s2 + $0x34] sm:$0xf]
      %v683 = vld [vmem:[%s2 + $0x38] sm:$0xf]
      %v684 = vld [vmem:[%s2 + $0x3c] sm:$0xf]
      %v685 = vld [vmem:[%s3] sm:$0xff]
      %v686 = vld [vmem:[%s3 + $0x8] sm:$0xff]
      %v687 = vld [vmem:[%s3 + $0x10] sm:$0xff]
      %v688 = vld [vmem:[%s3 + $0x18] sm:$0xff]
      %v689 = vld [vmem:[%s3 + $0x20] sm:$0xff]
      %v690 = vld [vmem:[%s3 + $0x28] sm:$0xff]
      %v691 = vld [vmem:[%s3 + $0x30] sm:$0xff]
      %v692 = vld [vmem:[%s3 + $0x38] sm:$0xff]
      %v693 = vld [vmem:[%s3 + $0x40] sm:$0xff]
      %v694 = vld [vmem:[%s3 + $0x48] sm:$0xff]
      %v695 = vld [vmem:[%s3 + $0x50] sm:$0xff]
      %v696 = vld [vmem:[%s3 + $0x58] sm:$0xff]
      %v697 = vld [vmem:[%s3 + $0x60] sm:$0xff]
      %v698 = vld [vmem:[%s3 + $0x68] sm:$0xff]
      %v699 = vld [vmem:[%s3 + $0x70] sm:$0xff]
      %v700 = vld [vmem:[%s3 + $0x78] sm:$0xff]
      %v701 = vpack.c.bf16 %v389, %v388
      %v702 = vpack.c.bf16 %v391, %v390
      %v703 = vpack.c.bf16 %v393, %v392
      %v704 = vpack.c.bf16 %v395, %v394
      %v705 = vpack.c.bf16 %v397, %v396
      %v706 = vpack.c.bf16 %v399, %v398
      %v707 = vpack.c.bf16 %v401, %v400
      %v708 = vpack.c.bf16 %v403, %v402
      %v709 = vpack.c.bf16 %v405, %v404
      %v710 = vpack.c.bf16 %v407, %v406
      %v711 = vpack.c.bf16 %v409, %v408
      %v712 = vpack.c.bf16 %v411, %v410
      %v713 = vpack.c.bf16 %v413, %v412
      %v714 = vpack.c.bf16 %v415, %v414
      %v715 = vpack.c.bf16 %v417, %v416
      %v716 = vpack.c.bf16 %v419, %v418
      %v733 = vunpack.c.l.b16 %v685
      %v734 = vunpack.c.h.b16 %v685
      %v735 = vunpack.c.l.b16 %v686
      %v736 = vunpack.c.h.b16 %v686
      %v737 = vunpack.c.l.b16 %v687
      %v738 = vunpack.c.h.b16 %v687
      %v739 = vunpack.c.l.b16 %v688
      %v740 = vunpack.c.h.b16 %v688
      %v741 = vunpack.c.l.b16 %v689
      %v742 = vunpack.c.h.b16 %v689
      %v743 = vunpack.c.l.b16 %v690
      %v744 = vunpack.c.h.b16 %v690
      %v745 = vunpack.c.l.b16 %v691
      %v746 = vunpack.c.h.b16 %v691
      %v747 = vunpack.c.l.b16 %v692
      %v748 = vunpack.c.h.b16 %v692
      %v749 = vunpack.c.l.b16 %v693
      %v750 = vunpack.c.h.b16 %v693
      %v751 = vunpack.c.l.b16 %v694
      %v752 = vunpack.c.h.b16 %v694
      %v753 = vunpack.c.l.b16 %v695
      %v754 = vunpack.c.h.b16 %v695
      %v755 = vunpack.c.l.b16 %v696
      %v756 = vunpack.c.h.b16 %v696
      %v757 = vunpack.c.l.b16 %v697
      %v758 = vunpack.c.h.b16 %v697
      %v759 = vunpack.c.l.b16 %v698
      %v760 = vunpack.c.h.b16 %v698
      %v761 = vunpack.c.l.b16 %v699
      %v762 = vunpack.c.h.b16 %v699
      %v763 = vunpack.c.l.b16 %v700
      %v764 = vunpack.c.h.b16 %v700
      %v765 = vpack.c.b16 %v735, %v733
      %v766 = vpack.c.b16 %v736, %v734
      %v767 = vpack.c.b16 %v739, %v737
      %v768 = vpack.c.b16 %v740, %v738
      %v769 = vpack.c.b16 %v743, %v741
      %v770 = vpack.c.b16 %v744, %v742
      %v771 = vpack.c.b16 %v747, %v745
      %v772 = vpack.c.b16 %v748, %v746
      %v773 = vpack.c.b16 %v751, %v749
      %v774 = vpack.c.b16 %v752, %v750
      %v775 = vpack.c.b16 %v755, %v753
      %v776 = vpack.c.b16 %v756, %v754
      %v777 = vpack.c.b16 %v759, %v757
      %v778 = vpack.c.b16 %v760, %v758
      %v779 = vpack.c.b16 %v763, %v761
      %v780 = vpack.c.b16 %v764, %v762
      %797 = vmatprep.subr.bf16.mxu0 0
      %798 = vmatpush1.bf16.msra.mxu0 %v701
      %799 = vmatprep.subr.bf16.mxu0 0
      %800 = vmatpush1.bf16.msra.mxu0 %v702
      %801 = vmatprep.subr.bf16.mxu0 0
      %802 = vmatpush1.bf16.msra.mxu0 %v703
      %803 = vmatprep.subr.bf16.mxu0 0
      %804 = vmatpush1.bf16.msra.mxu0 %v704
      %805 = vmatprep.subr.bf16.mxu0 0
      %806 = vmatpush1.bf16.msra.mxu0 %v705
      %807 = vmatprep.subr.bf16.mxu0 0
      %808 = vmatpush1.bf16.msra.mxu0 %v706
      %809 = vmatprep.subr.bf16.mxu0 0
      %810 = vmatpush1.bf16.msra.mxu0 %v707
      %811 = vmatprep.subr.bf16.mxu0 0
      %812 = vmatpush1.bf16.msra.mxu0 %v708
      %813 = vmatprep.subr.bf16.mxu0 0
      %814 = vmatpush1.bf16.msra.mxu0 %v709
      %815 = vmatprep.subr.bf16.mxu0 0
      %816 = vmatpush1.bf16.msra.mxu0 %v710
      %817 = vmatprep.subr.bf16.mxu0 0
      %818 = vmatpush1.bf16.msra.mxu0 %v711
      %819 = vmatprep.subr.bf16.mxu0 0
      %820 = vmatpush1.bf16.msra.mxu0 %v712
      %821 = vmatprep.subr.bf16.mxu0 0
      %822 = vmatpush1.bf16.msra.mxu0 %v713
      %823 = vmatprep.subr.bf16.mxu0 0
      %824 = vmatpush1.bf16.msra.mxu0 %v714
      %825 = vmatprep.subr.bf16.mxu0 0
      %826 = vmatpush1.bf16.msra.mxu0 %v715
      %827 = vmatprep.subr.bf16.mxu0 0
      %828 = vmatpush1.bf16.msra.mxu0 %v716
      %829 = vmatprep.mubr.bf16.mxu0 %v766
      %830 = vmatmul.mubr.bf16.gmra.mrb[0].mxu0 %v765
      %v831 = vpop.f32.mrb[0].mxu0
      %v832 = vadd.f32 0.0, %v831
      %v833 = vpop.f32.mrb[0].mxu0
      %v834 = vpop.f32.mrb[0].mxu0
      %v835 = vadd.f32 0.0, %v834
      %v836 = vpop.f32.mrb[0].mxu0
      %837 = vmatprep.mubr.bf16.mxu0 %v768
      %838 = vmatmul.mubr.bf16.gmra.mrb[0].mxu0 %v767
      %v839 = vpop.f32.mrb[0].mxu0
      %v840 = vadd.f32 0.0, %v839
      %v841 = vpop.f32.mrb[0].mxu0
      %v842 = vpop.f32.mrb[0].mxu0
      %v843 = vadd.f32 0.0, %v842
      %v844 = vpop.f32.mrb[0].mxu0
      %845 = vmatprep.mubr.bf16.mxu0 %v770
      %846 = vmatmul.mubr.bf16.gmra.mrb[0].mxu0 %v769
      %v847 = vpop.f32.mrb[0].mxu0
      %v848 = vadd.f32 0.0, %v847
      %v849 = vpop.f32.mrb[0].mxu0
      %v850 = vpop.f32.mrb[0].mxu0
      %v851 = vadd.f32 0.0, %v850
      %v852 = vpop.f32.mrb[0].mxu0
      %853 = vmatprep.mubr.bf16.mxu0 %v772
      %854 = vmatmul.mubr.bf16.gmra.mrb[0].mxu0 %v771
      %v855 = vpop.f32.mrb[0].mxu0
      %v856 = vadd.f32 0.0, %v855
      %v857 = vpop.f32.mrb[0].mxu0
      %v858 = vpop.f32.mrb[0].mxu0
      %v859 = vadd.f32 0.0, %v858
      %v860 = vpop.f32.mrb[0].mxu0
      %861 = vmatprep.mubr.bf16.mxu0 %v774
      %862 = vmatmul.mubr.bf16.gmra.mrb[0].mxu0 %v773
      %v863 = vpop.f32.mrb[0].mxu0
      %v864 = vadd.f32 0.0, %v863
      %v865 = vpop.f32.mrb[0].mxu0
      %v866 = vpop.f32.mrb[0].mxu0
      %v867 = vadd.f32 0.0, %v866
      %v868 = vpop.f32.mrb[0].mxu0
      %869 = vmatprep.mubr.bf16.mxu0 %v776
      %870 = vmatmul.mubr.bf16.gmra.mrb[0].mxu0 %v775
      %v871 = vpop.f32.mrb[0].mxu0
      %v872 = vadd.f32 0.0, %v871
      %v873 = vpop.f32.mrb[0].mxu0
      %v874 = vpop.f32.mrb[0].mxu0
      %v875 = vadd.f32 0.0, %v874
      %v876 = vpop.f32.mrb[0].mxu0
      %877 = vmatprep.mubr.bf16.mxu0 %v778
      %878 = vmatmul.mubr.bf16.gmra.mrb[0].mxu0 %v777
      %v879 = vpop.f32.mrb[0].mxu0
      %v880 = vadd.f32 0.0, %v879
      %v881 = vpop.f32.mrb[0].mxu0
      %v882 = vpop.f32.mrb[0].mxu0
      %v883 = vadd.f32 0.0, %v882
      %v884 = vpop.f32.mrb[0].mxu0
      %885 = vmatprep.mubr.bf16.mxu0 %v780
      %886 = vmatmul.mubr.bf16.gmra.mrb[0].mxu0 %v779
      %v887 = vpop.f32.mrb[0].mxu0
      %v888 = vadd.f32 0.0, %v887
      %v889 = vpop.f32.mrb[0].mxu0
      %v890 = vpop.f32.mrb[0].mxu0
      %v891 = vadd.f32 0.0, %v890
      %v892 = vpop.f32.mrb[0].mxu0
      %893 = vdwg.mxu0
      %v910 = vunpack.c.l.b16 %v669
      %v911 = vunpack.c.l.b16 %v670
      %v912 = vunpack.c.l.b16 %v671
      %v913 = vunpack.c.l.b16 %v672
      %v914 = vunpack.c.l.b16 %v673
      %v915 = vunpack.c.l.b16 %v674
      %v916 = vunpack.c.l.b16 %v675
      %v917 = vunpack.c.l.b16 %v676
      %v918 = vunpack.c.l.b16 %v677
      %v919 = vunpack.c.l.b16 %v678
      %v920 = vunpack.c.l.b16 %v679
      %v921 = vunpack.c.l.b16 %v680
      %v922 = vunpack.c.l.b16 %v681
      %v923 = vunpack.c.l.b16 %v682
      %v924 = vunpack.c.l.b16 %v683
      %v925 = vunpack.c.l.b16 %v684
      %v926 = vpack.c.b16 %v911, %v910
      %v927 = vpack.c.b16 %v913, %v912
      %v928 = vpack.c.b16 %v915, %v914
      %v929 = vpack.c.b16 %v917, %v916
      %v930 = vpack.c.b16 %v919, %v918
      %v931 = vpack.c.b16 %v921, %v920
      %v932 = vpack.c.b16 %v923, %v922
      %v933 = vpack.c.b16 %v925, %v924
      %942 = vmatprep.subr.bf16.mxu0 0
      %943 = vmatpush1.bf16.msra.mxu0 %v661
      %944 = vmatprep.subr.bf16.mxu0 0
      %945 = vmatpush1.bf16.msra.mxu0 %v662
      %946 = vmatprep.subr.bf16.mxu0 0
      %947 = vmatpush1.bf16.msra.mxu0 %v663
      %948 = vmatprep.subr.bf16.mxu0 0
      %949 = vmatpush1.bf16.msra.mxu0 %v664
      %950 = vmatprep.subr.bf16.mxu0 0
      %951 = vmatpush1.bf16.msra.mxu0 %v665
      %952 = vmatprep.subr.bf16.mxu0 0
      %953 = vmatpush1.bf16.msra.mxu0 %v666
      %954 = vmatprep.subr.bf16.mxu0 0
      %955 = vmatpush1.bf16.msra.mxu0 %v667
      %956 = vmatprep.subr.bf16.mxu0 0
      %957 = vmatpush1.bf16.msra.mxu0 %v668
      %958 = vmatprep.subr.bf16.mxu0 0
      %959 = vmatpush1.bf16.msra.mxu0 0
      %960 = vmatprep.subr.bf16.mxu0 0
      %961 = vmatpush1.bf16.msra.mxu0 0
      %962 = vmatprep.subr.bf16.mxu0 0
      %963 = vmatpush1.bf16.msra.mxu0 0
      %964 = vmatprep.subr.bf16.mxu0 0
      %965 = vmatpush1.bf16.msra.mxu0 0
      %966 = vmatprep.subr.bf16.mxu0 0
      %967 = vmatpush1.bf16.msra.mxu0 0
      %968 = vmatprep.subr.bf16.mxu0 0
      %969 = vmatpush1.bf16.msra.mxu0 0
      %970 = vmatprep.subr.bf16.mxu0 0
      %971 = vmatpush1.bf16.msra.mxu0 0
      %972 = vmatprep.subr.bf16.mxu0 0
      %973 = vmatpush1.bf16.msra.mxu0 0
      %974 = vmatprep.mubr.bf16.mxu0 0
      %975 = vmatmul.mubr.bf16.gmra.mrb[0].mxu0 %v926
      %v976 = vpop.f32.mrb[0].mxu0
      %v977 = vadd.f32 %v832, %v976
      %v978 = vpop.f32.mrb[0].mxu0
      %v979 = vpop.f32.mrb[0].mxu0
      %v980 = vadd.f32 %v835, %v979
      %v981 = vpop.f32.mrb[0].mxu0
      %982 = vmatprep.mubr.bf16.mxu0 0
      %983 = vmatmul.mubr.bf16.gmra.mrb[0].mxu0 %v927
      %v984 = vpop.f32.mrb[0].mxu0
      %v985 = vadd.f32 %v840, %v984
      %v986 = vpop.f32.mrb[0].mxu0
      %v987 = vpop.f32.mrb[0].mxu0
      %v988 = vadd.f32 %v843, %v987
      %v989 = vpop.f32.mrb[0].mxu0
      %990 = vmatprep.mubr.bf16.mxu0 0
      %991 = vmatmul.mubr.bf16.gmra.mrb[0].mxu0 %v928
      %v992 = vpop.f32.mrb[0].mxu0
      %v993 = vadd.f32 %v848, %v992
      %v994 = vpop.f32.mrb[0].mxu0
      %v995 = vpop.f32.mrb[0].mxu0
      %v996 = vadd.f32 %v851, %v995
      %v997 = vpop.f32.mrb[0].mxu0
      %998 = vmatprep.mubr.bf16.mxu0 0
      %999 = vmatmul.mubr.bf16.gmra.mrb[0].mxu0 %v929
      %v1000 = vpop.f32.mrb[0].mxu0
      %v1001 = vadd.f32 %v856, %v1000
      %v1002 = vpop.f32.mrb[0].mxu0
      %v1003 = vpop.f32.mrb[0].mxu0
      %v1004 = vadd.f32 %v859, %v1003
      %v1005 = vpop.f32.mrb[0].mxu0
      %1006 = vmatprep.mubr.bf16.mxu0 0
      %1007 = vmatmul.mubr.bf16.gmra.mrb[0].mxu0 %v930
      %v1008 = vpop.f32.mrb[0].mxu0
      %v1009 = vadd.f32 %v864, %v1008
      %v1010 = vpop.f32.mrb[0].mxu0
      %v1011 = vpop.f32.mrb[0].mxu0
      %v1012 = vadd.f32 %v867, %v1011
      %v1013 = vpop.f32.mrb[0].mxu0
      %1014 = vmatprep.mubr.bf16.mxu0 0
      %1015 = vmatmul.mubr.bf16.gmra.mrb[0].mxu0 %v931
      %v1016 = vpop.f32.mrb[0].mxu0
      %v1017 = vadd.f32 %v872, %v1016
      %v1018 = vpop.f32.mrb[0].mxu0
      %v1019 = vpop.f32.mrb[0].mxu0
      %v1020 = vadd.f32 %v875, %v1019
      %v1021 = vpop.f32.mrb[0].mxu0
      %1022 = vmatprep.mubr.bf16.mxu0 0
      %1023 = vmatmul.mubr.bf16.gmra.mrb[0].mxu0 %v932
      %v1024 = vpop.f32.mrb[0].mxu0
      %v1025 = vadd.f32 %v880, %v1024
      %v1026 = vpop.f32.mrb[0].mxu0
      %v1027 = vpop.f32.mrb[0].mxu0
      %v1028 = vadd.f32 %v883, %v1027
      %v1029 = vpop.f32.mrb[0].mxu0
      %1030 = vmatprep.mubr.bf16.mxu0 0
      %1031 = vmatmul.mubr.bf16.gmra.mrb[0].mxu0 %v933
      %v1032 = vpop.f32.mrb[0].mxu0
      %v1033 = vadd.f32 %v888, %v1032
      %v1034 = vpop.f32.mrb[0].mxu0
      %v1035 = vpop.f32.mrb[0].mxu0
      %v1036 = vadd.f32 %v891, %v1035
      %v1037 = vpop.f32.mrb[0].mxu0
      %1038 = vdwg.mxu0
      %v1039 = vld [vmem:[%s4] sm:$0xff]
      %v1040 = vld [vmem:[%s4 + $0x8] sm:$0xff]
      %v1041 = vld [vmem:[%s4 + $0x10] sm:$0xff]
      %v1042 = vld [vmem:[%s4 + $0x18] sm:$0xff]
      %v1043 = vld [vmem:[%s4 + $0x20] sm:$0xff]
      %v1044 = vld [vmem:[%s4 + $0x28] sm:$0xff]
      %v1045 = vld [vmem:[%s4 + $0x30] sm:$0xff]
      %v1046 = vld [vmem:[%s4 + $0x38] sm:$0xff]
      %v1047 = vld [vmem:[%s4 + $0x40] sm:$0xff]
      %v1048 = vld [vmem:[%s4 + $0x48] sm:$0xff]
      %v1049 = vld [vmem:[%s4 + $0x50] sm:$0xff]
      %v1050 = vld [vmem:[%s4 + $0x58] sm:$0xff]
      %v1051 = vld [vmem:[%s4 + $0x60] sm:$0xff]
      %v1052 = vld [vmem:[%s4 + $0x68] sm:$0xff]
      %v1053 = vld [vmem:[%s4 + $0x70] sm:$0xff]
      %v1054 = vld [vmem:[%s4 + $0x78] sm:$0xff]
      %1056 = vset.pattern.permute.xlu0 0
      %1057 = vperm.xlu0 %1056, %v1039
      %v1058 = vpop.permute.xlu0 %1057
      %1061 = vset.pattern.permute.xlu0 0
      %1062 = vperm.xlu0 %1061, %v1040
      %v1063 = vpop.permute.xlu0 %1062
      %1066 = vset.pattern.permute.xlu0 0
      %1067 = vperm.xlu0 %1066, %v1041
      %v1068 = vpop.permute.xlu0 %1067
      %1071 = vset.pattern.permute.xlu0 0
      %1072 = vperm.xlu0 %1071, %v1042
      %v1073 = vpop.permute.xlu0 %1072
      %1076 = vset.pattern.permute.xlu0 0
      %1077 = vperm.xlu0 %1076, %v1043
      %v1078 = vpop.permute.xlu0 %1077
      %1081 = vset.pattern.permute.xlu0 0
      %1082 = vperm.xlu0 %1081, %v1044
      %v1083 = vpop.permute.xlu0 %1082
      %1086 = vset.pattern.permute.xlu0 0
      %1087 = vperm.xlu0 %1086, %v1045
      %v1088 = vpop.permute.xlu0 %1087
      %1091 = vset.pattern.permute.xlu0 0
      %1092 = vperm.xlu0 %1091, %v1046
      %v1093 = vpop.permute.xlu0 %1092
      %1096 = vset.pattern.permute.xlu0 0
      %1097 = vperm.xlu0 %1096, %v1047
      %v1098 = vpop.permute.xlu0 %1097
      %1101 = vset.pattern.permute.xlu0 0
      %1102 = vperm.xlu0 %1101, %v1048
      %v1103 = vpop.permute.xlu0 %1102
      %1106 = vset.pattern.permute.xlu0 0
      %1107 = vperm.xlu0 %1106, %v1049
      %v1108 = vpop.permute.xlu0 %1107
      %1111 = vset.pattern.permute.xlu0 0
      %1112 = vperm.xlu0 %1111, %v1050
      %v1113 = vpop.permute.xlu0 %1112
      %1116 = vset.pattern.permute.xlu0 0
      %1117 = vperm.xlu0 %1116, %v1051
      %v1118 = vpop.permute.xlu0 %1117
      %1121 = vset.pattern.permute.xlu0 0
      %1122 = vperm.xlu0 %1121, %v1052
      %v1123 = vpop.permute.xlu0 %1122
      %1126 = vset.pattern.permute.xlu0 0
      %1127 = vperm.xlu0 %1126, %v1053
      %v1128 = vpop.permute.xlu0 %1127
      %1131 = vset.pattern.permute.xlu0 0
      %1132 = vperm.xlu0 %1131, %v1054
      %v1133 = vpop.permute.xlu0 %1132
      %v1135 = vadd.f32 %v977, %v1058
      %v1136 = vadd.f32 %v980, %v1063
      %v1137 = vadd.f32 %v985, %v1068
      %v1138 = vadd.f32 %v988, %v1073
      %v1139 = vadd.f32 %v993, %v1078
      %v1140 = vadd.f32 %v996, %v1083
      %v1141 = vadd.f32 %v1001, %v1088
      %v1142 = vadd.f32 %v1004, %v1093
      %v1143 = vadd.f32 %v1009, %v1098
      %v1144 = vadd.f32 %v1012, %v1103
      %v1145 = vadd.f32 %v1017, %v1108
      %v1146 = vadd.f32 %v1020, %v1113
      %v1147 = vadd.f32 %v1025, %v1118
      %v1148 = vadd.f32 %v1028, %v1123
      %v1149 = vadd.f32 %v1033, %v1128
      %v1150 = vadd.f32 %v1036, %v1133
      %v1151 = vmax.f32 %v1135, 0.0
      %v1152 = vmax.f32 %v1136, 0.0
      %v1153 = vmax.f32 %v1137, 0.0
      %v1154 = vmax.f32 %v1138, 0.0
      %v1155 = vmax.f32 %v1139, 0.0
      %v1156 = vmax.f32 %v1140, 0.0
      %v1157 = vmax.f32 %v1141, 0.0
      %v1158 = vmax.f32 %v1142, 0.0
      %v1159 = vmax.f32 %v1143, 0.0
      %v1160 = vmax.f32 %v1144, 0.0
      %v1161 = vmax.f32 %v1145, 0.0
      %v1162 = vmax.f32 %v1146, 0.0
      %v1163 = vmax.f32 %v1147, 0.0
      %v1164 = vmax.f32 %v1148, 0.0
      %v1165 = vmax.f32 %v1149, 0.0
      %v1166 = vmax.f32 %v1150, 0.0
      %v1167 = vld [vmem:[%s5] sm:$0xff]
      %v1168 = vld [vmem:[%s5 + $0x8] sm:$0xff]
      %v1169 = vld [vmem:[%s5 + $0x10] sm:$0xff]
      %v1170 = vld [vmem:[%s5 + $0x18] sm:$0xff]
      %v1171 = vld [vmem:[%s5 + $0x20] sm:$0xff]
      %v1172 = vld [vmem:[%s5 + $0x28] sm:$0xff]
      %v1173 = vld [vmem:[%s5 + $0x30] sm:$0xff]
      %v1174 = vld [vmem:[%s5 + $0x38] sm:$0xff]
      %v1175 = vld [vmem:[%s5 + $0x40] sm:$0xff]
      %v1176 = vld [vmem:[%s5 + $0x48] sm:$0xff]
      %v1177 = vld [vmem:[%s5 + $0x50] sm:$0xff]
      %v1178 = vld [vmem:[%s5 + $0x58] sm:$0xff]
      %v1179 = vld [vmem:[%s5 + $0x60] sm:$0xff]
      %v1180 = vld [vmem:[%s5 + $0x68] sm:$0xff]
      %v1181 = vld [vmem:[%s5 + $0x70] sm:$0xff]
      %v1182 = vld [vmem:[%s5 + $0x78] sm:$0xff]
      %1184 = vset.pattern.permute.xlu0 0
      %1185 = vperm.xlu0 %1184, %v1167
      %v1186 = vpop.permute.xlu0 %1185
      %1189 = vset.pattern.permute.xlu0 0
      %1190 = vperm.xlu0 %1189, %v1168
      %v1191 = vpop.permute.xlu0 %1190
      %1194 = vset.pattern.permute.xlu0 0
      %1195 = vperm.xlu0 %1194, %v1169
      %v1196 = vpop.permute.xlu0 %1195
      %1199 = vset.pattern.permute.xlu0 0
      %1200 = vperm.xlu0 %1199, %v1170
      %v1201 = vpop.permute.xlu0 %1200
      %1204 = vset.pattern.permute.xlu0 0
      %1205 = vperm.xlu0 %1204, %v1171
      %v1206 = vpop.permute.xlu0 %1205
      %1209 = vset.pattern.permute.xlu0 0
      %1210 = vperm.xlu0 %1209, %v1172
      %v1211 = vpop.permute.xlu0 %1210
      %1214 = vset.pattern.permute.xlu0 0
      %1215 = vperm.xlu0 %1214, %v1173
      %v1216 = vpop.permute.xlu0 %1215
      %1219 = vset.pattern.permute.xlu0 0
      %1220 = vperm.xlu0 %1219, %v1174
      %v1221 = vpop.permute.xlu0 %1220
      %1224 = vset.pattern.permute.xlu0 0
      %1225 = vperm.xlu0 %1224, %v1175
      %v1226 = vpop.permute.xlu0 %1225
      %1229 = vset.pattern.permute.xlu0 0
      %1230 = vperm.xlu0 %1229, %v1176
      %v1231 = vpop.permute.xlu0 %1230
      %1234 = vset.pattern.permute.xlu0 0
      %1235 = vperm.xlu0 %1234, %v1177
      %v1236 = vpop.permute.xlu0 %1235
      %1239 = vset.pattern.permute.xlu0 0
      %1240 = vperm.xlu0 %1239, %v1178
      %v1241 = vpop.permute.xlu0 %1240
      %1244 = vset.pattern.permute.xlu0 0
      %1245 = vperm.xlu0 %1244, %v1179
      %v1246 = vpop.permute.xlu0 %1245
      %1249 = vset.pattern.permute.xlu0 0
      %1250 = vperm.xlu0 %1249, %v1180
      %v1251 = vpop.permute.xlu0 %1250
      %1254 = vset.pattern.permute.xlu0 0
      %1255 = vperm.xlu0 %1254, %v1181
      %v1256 = vpop.permute.xlu0 %1255
      %1259 = vset.pattern.permute.xlu0 0
      %1260 = vperm.xlu0 %1259, %v1182
      %v1261 = vpop.permute.xlu0 %1260
      %v1263 = vmul.f32 %v1151, %v1186
      %v1264 = vmul.f32 %v1152, %v1191
      %v1265 = vmul.f32 %v1153, %v1196
      %v1266 = vmul.f32 %v1154, %v1201
      %v1267 = vmul.f32 %v1155, %v1206
      %v1268 = vmul.f32 %v1156, %v1211
      %v1269 = vmul.f32 %v1157, %v1216
      %v1270 = vmul.f32 %v1158, %v1221
      %v1271 = vmul.f32 %v1159, %v1226
      %v1272 = vmul.f32 %v1160, %v1231
      %v1273 = vmul.f32 %v1161, %v1236
      %v1274 = vmul.f32 %v1162, %v1241
      %v1275 = vmul.f32 %v1163, %v1246
      %v1276 = vmul.f32 %v1164, %v1251
      %v1277 = vmul.f32 %v1165, %v1256
      %v1278 = vmul.f32 %v1166, %v1261
      %vm1279 = vcmask 523264
      %v1280 = vsel %vm1279, %v1263, 0.0
      %v1281 = vsel %vm1279, %v1264, 0.0
      %v1282 = vadd.f32 %v1280, %v1281
      %v1283 = vsel %vm1279, %v1265, 0.0
      %v1284 = vadd.f32 %v1282, %v1283
      %v1285 = vsel %vm1279, %v1266, 0.0
      %v1286 = vadd.f32 %v1284, %v1285
      %v1287 = vsel %vm1279, %v1267, 0.0
      %v1288 = vadd.f32 %v1286, %v1287
      %v1289 = vsel %vm1279, %v1268, 0.0
      %v1290 = vadd.f32 %v1288, %v1289
      %v1291 = vsel %vm1279, %v1269, 0.0
      %v1292 = vadd.f32 %v1290, %v1291
      %v1293 = vsel %vm1279, %v1270, 0.0
      %v1294 = vadd.f32 %v1292, %v1293
      %v1295 = vsel %vm1279, %v1271, 0.0
      %v1296 = vadd.f32 %v1294, %v1295
      %v1297 = vsel %vm1279, %v1272, 0.0
      %v1298 = vadd.f32 %v1296, %v1297
      %v1299 = vsel %vm1279, %v1273, 0.0
      %v1300 = vadd.f32 %v1298, %v1299
      %v1301 = vsel %vm1279, %v1274, 0.0
      %v1302 = vadd.f32 %v1300, %v1301
      %v1303 = vsel %vm1279, %v1275, 0.0
      %v1304 = vadd.f32 %v1302, %v1303
      %v1305 = vsel %vm1279, %v1276, 0.0
      %v1306 = vadd.f32 %v1304, %v1305
      %v1307 = vsel %vm1279, %v1277, 0.0
      %v1308 = vadd.f32 %v1306, %v1307
      %v1309 = vsel %vm1279, %v1278, 0.0
      %v1310 = vadd.f32 %v1308, %v1309
      %v1311 = vrot.slane %v1310, 4
      %v1312 = vadd.f32 %v1310, %v1311
      %v1313 = vrot.slane %v1312, 2
      %v1314 = vadd.f32 %v1312, %v1313
      %v1315 = vrot.slane %v1314, 1
      %v1316 = vadd.f32 %v1314, %v1315
      %v1317 = vld [vmem:[#allocation2] sm:$0x1]
      %1319 = vset.pattern.permute.xlu0 0
      %1320 = vperm.xlu0 %1319, %v1317
      %v1321 = vpop.permute.xlu0 %1320
      %v1323 = vlaneseq
      %v1324 = vshrl.u32 %v1323, 7
      %v1325 = vsub.s32 0, %v1324
      %v1326 = vrot.slane %v1321, %v1325
      %v1327 = vadd.f32 %v1316, %v1326
      %v1328 = vxor.u32 %v1327, 2147483648
      %v1329 = vmul.f32 %v1328, 1.442695
      %v1330 = vpow.pop %v1329
      %v1331 = vadd.f32 %v1330, 1.0
      %v1332 = vrcp.pop %v1331
      %v1333 = vmul.f32 1.0, %v1332
      %v1334 = vld [vmem:[%s8] sm:$0xff]
      %v1335 = vld [vmem:[%s8 + $0x8] sm:$0xff]
      %v1336 = vld [vmem:[%s8 + $0x10] sm:$0xff]
      %v1337 = vld [vmem:[%s8 + $0x18] sm:$0xff]
      %v1338 = vld [vmem:[%s8 + $0x20] sm:$0xff]
      %v1339 = vld [vmem:[%s8 + $0x28] sm:$0xff]
      %v1340 = vld [vmem:[%s8 + $0x30] sm:$0xff]
      %v1341 = vld [vmem:[%s8 + $0x38] sm:$0xff]
      %v1342 = vld [vmem:[%s8 + $0x40] sm:$0xff]
      %v1343 = vld [vmem:[%s8 + $0x48] sm:$0xff]
      %v1344 = vld [vmem:[%s8 + $0x50] sm:$0xff]
      %v1345 = vld [vmem:[%s8 + $0x58] sm:$0xff]
      %v1346 = vld [vmem:[%s8 + $0x60] sm:$0xff]
      %v1347 = vld [vmem:[%s8 + $0x68] sm:$0xff]
      %v1348 = vld [vmem:[%s8 + $0x70] sm:$0xff]
      %v1349 = vld [vmem:[%s8 + $0x78] sm:$0xff]
      %v1351 = vsel %vm1279, %v1333, 0
      %1353 = vmatprep.subr.mxu0 %v1335
      %1354 = vmatpush1.msra.mxu0 %v1334
      %1355 = vmatprep.subr.mxu0 %v1337
      %1356 = vmatpush1.msra.mxu0 %v1336
      %1357 = vmatprep.subr.mxu0 %v1339
      %1358 = vmatpush1.msra.mxu0 %v1338
      %1359 = vmatprep.subr.mxu0 %v1341
      %1360 = vmatpush1.msra.mxu0 %v1340
      %1361 = vmatprep.subr.mxu0 %v1343
      %1362 = vmatpush1.msra.mxu0 %v1342
      %1363 = vmatprep.subr.mxu0 %v1345
      %1364 = vmatpush1.msra.mxu0 %v1344
      %1365 = vmatprep.subr.mxu0 %v1347
      %1366 = vmatpush1.msra.mxu0 %v1346
      %1367 = vmatprep.subr.mxu0 %v1349
      %1368 = vmatpush1.msra.mxu0 %v1348
      %1369 = vmatprep.subr.mxu0 0.0
      %1370 = vmatpush1.msra.mxu0 0.0
      %1371 = vmatprep.subr.mxu0 0.0
      %1372 = vmatpush1.msra.mxu0 0.0
      %1373 = vmatprep.subr.mxu0 0.0
      %1374 = vmatpush1.msra.mxu0 0.0
      %1375 = vmatprep.subr.mxu0 0.0
      %1376 = vmatpush1.msra.mxu0 0.0
      %1377 = vmatprep.subr.mxu0 0.0
      %1378 = vmatpush1.msra.mxu0 0.0
      %1379 = vmatprep.subr.mxu0 0.0
      %1380 = vmatpush1.msra.mxu0 0.0
      %1381 = vmatprep.subr.mxu0 0.0
      %1382 = vmatpush1.msra.mxu0 0.0
      %1383 = vmatprep.subr.mxu0 0.0
      %1384 = vmatpush1.msra.mxu0 0.0
      %1385 = vmatprep.subr.mxu0 0.0
      %1386 = vmatpush1.msra.mxu0 0.0
      %1387 = vmatprep.subr.mxu0 0.0
      %1388 = vmatpush1.msra.mxu0 0.0
      %1389 = vmatprep.subr.mxu0 0.0
      %1390 = vmatpush1.msra.mxu0 0.0
      %1391 = vmatprep.subr.mxu0 0.0
      %1392 = vmatpush1.msra.mxu0 0.0
      %1393 = vmatprep.subr.mxu0 0.0
      %1394 = vmatpush1.msra.mxu0 0.0
      %1395 = vmatprep.subr.mxu0 0.0
      %1396 = vmatpush1.msra.mxu0 0.0
      %1397 = vmatprep.subr.mxu0 0.0
      %1398 = vmatpush1.msra.mxu0 0.0
      %1399 = vmatprep.subr.mxu0 0.0
      %1400 = vmatpush1.msra.mxu0 0.0
      %1401 = vmatprep.subr.mxu0 0.0
      %1402 = vmatpush1.msra.mxu0 0.0
      %1403 = vmatprep.subr.mxu0 0.0
      %1404 = vmatpush1.msra.mxu0 0.0
      %1405 = vmatprep.subr.mxu0 0.0
      %1406 = vmatpush1.msra.mxu0 0.0
      %1407 = vmatprep.subr.mxu0 0.0
      %1408 = vmatpush1.msra.mxu0 0.0
      %1409 = vmatprep.subr.mxu0 0.0
      %1410 = vmatpush1.msra.mxu0 0.0
      %1411 = vmatprep.subr.mxu0 0.0
      %1412 = vmatpush1.msra.mxu0 0.0
      %1413 = vmatprep.subr.mxu0 0.0
      %1414 = vmatpush1.msra.mxu0 0.0
      %1415 = vmatprep.subr.mxu0 0.0
      %1416 = vmatpush1.msra.mxu0 0.0
      %1417 = vmatprep.mubr.f32.mxu0 0.0
      %1418 = vmatmul.mubr.f32.gmra.mrb[0].mxu0 %v1351
      %v1419 = vpop.f32.mrb[0].mxu0
      %v1420 = vadd.f32 0.0, %v1419
      %v1421 = vpop.f32.mrb[0].mxu0
      %v1422 = vadd.f32 0.0, %v1421
      %1423 = vdwg.mxu0
      %v1424 = vlaneseq
      %v1425 = vshrl.u32 %v1424, 7
      %v1426 = vsub.s32 0, %v1425
      %v1427 = vrot.slane %v1420, %v1426
      %v1428 = vlaneseq
      %v1429 = vshrl.u32 %v1428, 7
      %v1430 = vsub.s32 0, %v1429
      %v1431 = vrot.slane %v1422, %v1430
      %v1432 = vmul.f32 %v356, %v1427
      %v1433 = vmul.f32 %v357, %v1431
      %v1434 = vmul.f32 %v358, %v1427
      %v1435 = vmul.f32 %v359, %v1431
      %v1436 = vmul.f32 %v360, %v1427
      %v1437 = vmul.f32 %v361, %v1431
      %v1438 = vmul.f32 %v362, %v1427
      %v1439 = vmul.f32 %v363, %v1431
      %v1440 = vmul.f32 %v364, %v1427
      %v1441 = vmul.f32 %v365, %v1431
      %v1442 = vmul.f32 %v366, %v1427
      %v1443 = vmul.f32 %v367, %v1431
      %v1444 = vmul.f32 %v368, %v1427
      %v1445 = vmul.f32 %v369, %v1431
      %v1446 = vmul.f32 %v370, %v1427
      %v1447 = vmul.f32 %v371, %v1431
      %v1448 = vmul.f32 %v372, %v1427
      %v1449 = vmul.f32 %v373, %v1431
      %v1450 = vmul.f32 %v374, %v1427
      %v1451 = vmul.f32 %v375, %v1431
      %v1452 = vmul.f32 %v376, %v1427
      %v1453 = vmul.f32 %v377, %v1431
      %v1454 = vmul.f32 %v378, %v1427
      %v1455 = vmul.f32 %v379, %v1431
      %v1456 = vmul.f32 %v380, %v1427
      %v1457 = vmul.f32 %v381, %v1431
      %v1458 = vmul.f32 %v382, %v1427
      %v1459 = vmul.f32 %v383, %v1431
      %v1460 = vmul.f32 %v384, %v1427
      %v1461 = vmul.f32 %v385, %v1431
      %v1462 = vmul.f32 %v386, %v1427
      %v1463 = vmul.f32 %v387, %v1431
      %1464 = vst [vmem:[%s354] sm:$0xff] %v1432
      %1465 = vst [vmem:[%s354 + $0x8] sm:$0xff] %v1433
      %1466 = vst [vmem:[%s354 + $0x10] sm:$0xff] %v1434
      %1467 = vst [vmem:[%s354 + $0x18] sm:$0xff] %v1435
      %1468 = vst [vmem:[%s354 + $0x20] sm:$0xff] %v1436
      %1469 = vst [vmem:[%s354 + $0x28] sm:$0xff] %v1437
      %1470 = vst [vmem:[%s354 + $0x30] sm:$0xff] %v1438
      %1471 = vst [vmem:[%s354 + $0x38] sm:$0xff] %v1439
      %1472 = vst [vmem:[%s354 + $0x40] sm:$0xff] %v1440
      %1473 = vst [vmem:[%s354 + $0x48] sm:$0xff] %v1441
      %1474 = vst [vmem:[%s354 + $0x50] sm:$0xff] %v1442
      %1475 = vst [vmem:[%s354 + $0x58] sm:$0xff] %v1443
      %1476 = vst [vmem:[%s354 + $0x60] sm:$0xff] %v1444
      %1477 = vst [vmem:[%s354 + $0x68] sm:$0xff] %v1445
      %1478 = vst [vmem:[%s354 + $0x70] sm:$0xff] %v1446
      %1479 = vst [vmem:[%s354 + $0x78] sm:$0xff] %v1447
      %1480 = vst [vmem:[%s354 + $0x80] sm:$0xff] %v1448
      %1481 = vst [vmem:[%s354 + $0x88] sm:$0xff] %v1449
      %1482 = vst [vmem:[%s354 + $0x90] sm:$0xff] %v1450
      %1483 = vst [vmem:[%s354 + $0x98] sm:$0xff] %v1451
      %1484 = vst [vmem:[%s354 + $0xa0] sm:$0xff] %v1452
      %1485 = vst [vmem:[%s354 + $0xa8] sm:$0xff] %v1453
      %1486 = vst [vmem:[%s354 + $0xb0] sm:$0xff] %v1454
      %1487 = vst [vmem:[%s354 + $0xb8] sm:$0xff] %v1455
      %1488 = vst [vmem:[%s354 + $0xc0] sm:$0xff] %v1456
      %1489 = vst [vmem:[%s354 + $0xc8] sm:$0xff] %v1457
      %1490 = vst [vmem:[%s354 + $0xd0] sm:$0xff] %v1458
      %1491 = vst [vmem:[%s354 + $0xd8] sm:$0xff] %v1459
      %1492 = vst [vmem:[%s354 + $0xe0] sm:$0xff] %v1460
      %1493 = vst [vmem:[%s354 + $0xe8] sm:$0xff] %v1461
      %1494 = vst [vmem:[%s354 + $0xf0] sm:$0xff] %v1462
      %1495 = vst [vmem:[%s354 + $0xf8] sm:$0xff] %v1463
      %p1496 = scmp.lt.s32.totalorder %s22, 1
      %s1497 = scalar_select %p1496, %s22, 1
      %s1498 = smul.addr %s1497, 32
      %s1499 = smul.addr %s1498, 8
      %s1500 = scalar_lea.vmem %s9, %s1499
      // Predicated region
      $region57: #{attention_block.1} parent=55 // pred_check
        %p1501 = pneg %p239
      $region58: #{attention_block.1} parent=55 // pred_check_branch
        %1503 = sbr.rel (%p1501) target = $region60
      $region59: #{attention_block.1} parent=55 // pred_region
        _
      $region60: #{attention_block.1} parent=55 // pred_fallthru
        _
    $region56: #{attention_block.1} parent=5 // pred_fallthru
      _
    %p1504 = scmp.le.s32.totalorder 2, %s17
    // Predicated region
    $region61: #{attention_block.1} parent=5 // pred_check
      %p1505 = pneg %p1504
    $region62: #{attention_block.1} parent=5 // pred_check_branch
      %1507 = sbr.rel (%p1505) target = $region64
    $region63: #{attention_block.1} parent=5 // pred_region
      %s1508 = ssub.s32 %s17, 2
      // Predicated region
      $region65: #{attention_block.1} parent=63 // pred_check
        %p1509 = pneg %p245
      $region66: #{attention_block.1} parent=63 // pred_check_branch
        %1511 = sbr.rel (%p1509) target = $region68
      $region67: #{attention_block.1} parent=63 // pred_region
        %p1512 = scmp.lt.s32.totalorder %s23, 1
        %s1513 = scalar_select %p1512, %s23, 1
        %s1514 = smul.addr %s1513, 32
        %s1515 = smul.addr %s1514, 8
        %s1516 = scalar_lea.vmem %s9, %s1515
      $region68: #{attention_block.1} parent=63 // pred_fallthru
        _
    $region64: #{attention_block.1} parent=5 // pred_fallthru
      _
  $region6: #{attention_block.1} parent=0 // loop_footer
    %s21 = sadd.s32 1, %s17
  $region7: #{attention_block.1} parent=0 // loop_footer_branch
    %16 = sbr.rel target = $region3
  $region8: #{attention_block.1} parent=0 // loop_exit
    _

</llo_original>
